<compile_context>
chip_gen: v7x
topology: tpu7x:2x2x1
jax: 0.10.0
libtpu: 0.0.40
codegen_flags: <defaults>
</compile_context>

<pallas_src>
import functools

import numpy as np
import jax
import jax.numpy as jnp
from jax import lax
from jax.experimental import pallas as pl
from jax.experimental.pallas import tpu as pltpu

# ----------------------------- constants ------------------------------------
NPOSE = 24 * 6                 # 144
NSHAPE = 10
NCAM = 3
NSTATE = NPOSE + NSHAPE + NCAM # 157
XDIM = 512 * 4                 # 2048
HID = 1024
FC1_IN = XDIM + NSTATE         # 2205

STATE_PAD = 256                # lane-aligned padded width of fused pose|shape|cam state


def _mm(a, b):
    """f32 matmul at HIGHEST precision (used for load-time folding & reference)."""
    return jnp.dot(a, b, precision=lax.Precision.HIGHEST)


# ----------------------------- Pallas kernel --------------------------------
def _regressor_kernel(x_ref, state_ref, a_ref, delta_ref, c_ref, state_out, *, n_iter):
    f32 = jnp.float32
    bf16 = jnp.bfloat16

    # Iteration-invariant image-feature term u = x @ A + c, computed once.
    # (A = W1x@W2@Wdec folded at load time; bf16 weights, f32 accumulation.)
    u = jnp.dot(x_ref[...], a_ref[...], preferred_element_type=f32) + c_ref[...]

    state = state_ref[...]                       # (B, STATE_PAD) f32, pose|shape|cam fused
    for _ in range(n_iter):
        # state' = state + state@Delta + u   (Delta = W1s@W2@Wdec, read at point of use)
        state = state + jnp.dot(state.astype(bf16), delta_ref[...],
                                preferred_element_type=f32) + u

    state_out[...] = state


# ----------------------------- wrapper ---------------------------------------
def _pad_to(a, shape):
    out = jnp.zeros(shape, a.dtype)
    return out.at[tuple(slice(0, s) for s in a.shape)].set(a)


def prepare_params(params):
    """One-time (model-load) eval-mode folding of the affine head, f32 HIGHEST."""
    w1psc = jnp.concatenate([params["w1p"], params["w1s"], params["w1c"]], axis=0)  # (157, HID)
    wdec = jnp.concatenate([params["wp"], params["ws"], params["wc"]], axis=1)      # (HID, 157)
    bdec = jnp.concatenate([params["bp"], params["bs"], params["bc"]], axis=1)      # (1, 157)

    w2wdec = _mm(params["w2"], wdec)                                                # (HID, 157)
    a_mat = _mm(params["w1x"], w2wdec)                                              # (XDIM, 157)
    delta = _mm(w1psc, w2wdec)                                                      # (157, 157)
    c_vec = _mm(_mm(params["b1"], params["w2"]) + params["b2"], wdec) + bdec        # (1, 157)

    return {
        "A": _pad_to(a_mat, (XDIM, STATE_PAD)).astype(jnp.bfloat16),            # (2048, 256)
        "Delta": _pad_to(delta, (STATE_PAD, STATE_PAD)).astype(jnp.bfloat16),   # (256, 256)
        "c": _pad_to(c_vec, (1, STATE_PAD)).astype(jnp.float32),                # (1, 256)
    }


def regressor_forward(x, init_pose, init_shape, init_cam, prepared, n_iter=3):
    """Runs the iterative regressor; returns (pred_pose, pred_shape, pred_cam)."""
    B = x.shape[0]
    x_bf = x.astype(jnp.bfloat16)
    state0 = _pad_to(
        jnp.concatenate([init_pose, init_shape, init_cam], axis=1).astype(jnp.float32),
        (B, STATE_PAD))

    flops = 2 * B * XDIM * STATE_PAD + n_iter * 2 * B * STATE_PAD * STATE_PAD
    bytes_accessed = (XDIM * STATE_PAD * 2            # A (bf16)
                      + STATE_PAD * STATE_PAD * 2     # Delta (bf16)
                      + STATE_PAD * 4                 # c
                      + B * XDIM * 2                  # x (bf16)
                      + 2 * B * STATE_PAD * 4)        # state in/out

    # NOTE: for B >= ~8 add a leading 'parallel' batch grid axis to use the
    # second TensorCore on v7x; at B=2 the kernel is DMA-bound so grid=(1,).
    state_out = pl.pallas_call(
        functools.partial(_regressor_kernel, n_iter=n_iter),
        grid=(1,),
        out_shape=jax.ShapeDtypeStruct((B, STATE_PAD), jnp.float32),
        in_specs=[
            pl.BlockSpec((B, XDIM), lambda i: (0, 0)),              # x
            pl.BlockSpec((B, STATE_PAD), lambda i: (0, 0)),         # fused state
            pl.BlockSpec((XDIM, STATE_PAD), lambda i: (0, 0)),      # A  (folded, bf16)
            pl.BlockSpec((STATE_PAD, STATE_PAD), lambda i: (0, 0)), # Delta (folded, bf16)
            pl.BlockSpec((1, STATE_PAD), lambda i: (0, 0)),         # c  (folded bias)
        ],
        out_specs=pl.BlockSpec((B, STATE_PAD), lambda i: (0, 0)),
        compiler_params=pltpu.CompilerParams(
            dimension_semantics=("arbitrary",)),
        cost_estimate=pl.CostEstimate(flops=int(flops), transcendentals=0,
                                      bytes_accessed=int(bytes_accessed)),
    )(x_bf, state0, prepared["A"], prepared["Delta"], prepared["c"])

    pred_pose = state_out[:, :NPOSE]
    pred_shape = state_out[:, NPOSE:NPOSE + NSHAPE]
    pred_cam = state_out[:, NPOSE + NSHAPE:NSTATE]
    return pred_pose, pred_shape, pred_cam


# ------------------------- plain-JAX reference & glue ------------------------
def regressor_forward_ref(x, init_pose, init_shape, init_cam, params, n_iter=3):
    """Pure-f32 layer-by-layer reference of the PyTorch loop (eval mode)."""
    w1 = jnp.concatenate(
        [params["w1x"], params["w1p"], params["w1s"], params["w1c"]], axis=0)
    pose, shp, cam = init_pose, init_shape, init_cam
    for _ in range(n_iter):
        xc = jnp.concatenate([x, pose, shp, cam], axis=1)
        xc = _mm(xc, w1) + params["b1"]
        xc = _mm(xc, params["w2"]) + params["b2"]
        pose = pose + _mm(xc, params["wp"]) + params["bp"]
        shp = shp + _mm(xc, params["ws"]) + params["bs"]
        cam = cam + _mm(xc, params["wc"]) + params["bc"]
    return pose, shp, cam


def rot6d_to_rotmat(x):
    x = x.reshape(-1, 3, 2)
    a1, a2 = x[:, :, 0], x[:, :, 1]
    b1 = a1 / jnp.linalg.norm(a1, axis=1, keepdims=True)
    b2 = a2 - jnp.sum(b1 * a2, axis=1, keepdims=True) * b1
    b2 = b2 / jnp.linalg.norm(b2, axis=1, keepdims=True)
    b3 = jnp.cross(b1, b2)
    return jnp.stack([b1, b2, b3], axis=-1)


def perspective_projection(points, rotation, translation, focal_length, camera_center):
    bs = points.shape[0]
    K = jnp.zeros((bs, 3, 3), jnp.float32)
    K = K.at[:, 0, 0].set(focal_length).at[:, 1, 1].set(focal_length).at[:, 2, 2].set(1.0)
    K = K.at[:, :-1, -1].set(camera_center)
    points = jnp.einsum("bij,bkj->bki", rotation, points)
    points = points + translation[:, None, :]
    projected = points / points[:, :, -1:]
    projected = jnp.einsum("bij,bkj->bki", K, projected)
    return projected[:, :, :-1]


def projection(pred_joints, pred_camera):
    tz = 2.0 * 5000.0 / (224.0 * pred_camera[:, 0] + 1e-9)
    pred_cam_t = jnp.stack([pred_camera[:, 1], pred_camera[:, 2], tz], axis=-1)
    bs = pred_joints.shape[0]
    camera_center = jnp.zeros((bs, 2), jnp.float32)
    rot = jnp.broadcast_to(jnp.eye(3, dtype=jnp.float32)[None], (bs, 3, 3))
    kp2d = perspective_projection(pred_joints, rot, pred_cam_t, 5000.0, camera_center)
    return kp2d / (224.0 / 2.0)


# ----------------------------- parameter init --------------------------------
def init_params(key):
    ks = jax.random.split(key, 13)

    def unif(k, shape, fan_in):
        a = 1.0 / np.sqrt(fan_in)
        return jax.random.uniform(k, shape, jnp.float32, -a, a)

    def xavier(k, fan_in, fan_out, gain):
        a = gain * np.sqrt(6.0 / (fan_in + fan_out))
        return jax.random.uniform(k, (fan_in, fan_out), jnp.float32, -a, a)

    return {
        # fc1 weight (FC1_IN, 1024), split along the concat axis of the input
        "w1x": unif(ks[0], (XDIM, HID), FC1_IN),
        "w1p": unif(ks[1], (NPOSE, HID), FC1_IN),
        "w1s": unif(ks[2], (NSHAPE, HID), FC1_IN),
        "w1c": unif(ks[3], (NCAM, HID), FC1_IN),
        "b1":  unif(ks[4], (1, HID), FC1_IN),
        "w2":  unif(ks[5], (HID, HID), HID),
        "b2":  unif(ks[6], (1, HID), HID),
        # decoder heads: xavier_uniform(gain=0.01), default-uniform biases
        "wp":  xavier(ks[7], HID, NPOSE, 0.01),
        "bp":  unif(ks[8], (1, NPOSE), HID),
        "ws":  xavier(ks[9], HID, NSHAPE, 0.01),
        "bs":  unif(ks[10], (1, NSHAPE), HID),
        "wc":  xavier(ks[11], HID, NCAM, 0.01),
        "bc":  unif(ks[12], (1, NCAM), HID),
    }


def init_mean_params():
    """Deterministic stand-in for smpl_mean_params.npz."""
    identity6d = jnp.array([1.0, 0.0, 0.0, 1.0, 0.0, 0.0], jnp.float32)
    init_pose = jnp.tile(identity6d, (24,))[None, :]          # (1, 144)
    init_shape = jnp.zeros((1, NSHAPE), jnp.float32)          # (1, 10)
    init_cam = jnp.array([[0.9, 0.0, 0.0]], jnp.float32)      # (1, 3)
    return init_pose, init_shape, init_cam


# ----------------------------------- main ------------------------------------
if __name__ == "__main__":
    B = 2
    key = jax.random.PRNGKey(0)
    kx, kp = jax.random.split(key)

    x = jax.random.normal(kx, (B, XDIM), jnp.float32)          # ResNet-style feature
    params = init_params(kp)
    prepared = prepare_params(params)                          # one-time weight folding

    ip, ish, ic = init_mean_params()
    init_pose = jnp.broadcast_to(ip, (B, NPOSE))
    init_shape = jnp.broadcast_to(ish, (B, NSHAPE))
    init_cam = jnp.broadcast_to(ic, (B, NCAM))

    pred_pose, pred_shape, pred_cam = jax.block_until_ready(
        regressor_forward(x, init_pose, init_shape, init_cam, prepared, n_iter=3))

    # Correctness check against a pure-f32 layer-by-layer reference.
    ref_pose, ref_shape, ref_cam = regressor_forward_ref(
        x, init_pose, init_shape, init_cam, params, n_iter=3)
    np.testing.assert_allclose(np.asarray(pred_pose), np.asarray(ref_pose),
                               rtol=2e-3, atol=2e-3)
    np.testing.assert_allclose(np.asarray(pred_shape), np.asarray(ref_shape),
                               rtol=2e-3, atol=2e-3)
    np.testing.assert_allclose(np.asarray(pred_cam), np.asarray(ref_cam),
                               rtol=2e-3, atol=2e-3)

    # Downstream glue that has a clean in-script equivalent.
    pred_rotmat = rot6d_to_rotmat(pred_pose).reshape(B, 24, 3, 3)

    # TODO(synk): SMPL forward (vertices / joints) needs external model data;
    # exercise the projection math on deterministic stand-in joints instead.
    standin_joints = 0.2 * jax.random.normal(jax.random.PRNGKey(42), (B, 49, 3), jnp.float32)
    kp_2d = projection(standin_joints, pred_cam)

    jax.block_until_ready((pred_rotmat, kp_2d))
    print("KERNEL_OK")
</pallas_src>

<mosaic_0001>
module attributes {stable_mosaic.version = 11 : i64} {
  func.func @_regressor_kernel(%arg0: i32, %arg1: memref<2x2048xbf16, #tpu.memory_space<vmem>>, %arg2: memref<2x256xf32, #tpu.memory_space<vmem>>, %arg3: memref<2048x256xbf16, #tpu.memory_space<vmem>>, %arg4: memref<256x256xbf16, #tpu.memory_space<vmem>>, %arg5: memref<1x256xf32, #tpu.memory_space<vmem>>, %arg6: memref<2x256xf32, #tpu.memory_space<vmem>>) attributes {dimension_semantics = [#tpu.dimension_semantics<arbitrary>], iteration_bounds = array<i64: 1>, scalar_prefetch = 0 : i64, scratch_operands = 0 : i64, tpu.core_type = #tpu.core_type<tc>, window_params = [{pipeline_mode = #tpu.pipeline_mode<synchronous>, transform_indices = @transform_0, window_bounds = array<i64: 2, 2048>}, {pipeline_mode = #tpu.pipeline_mode<synchronous>, transform_indices = @transform_1, window_bounds = array<i64: 2, 256>}, {pipeline_mode = #tpu.pipeline_mode<synchronous>, transform_indices = @transform_2, window_bounds = array<i64: 2048, 256>}, {pipeline_mode = #tpu.pipeline_mode<synchronous>, transform_indices = @transform_3, window_bounds = array<i64: 256, 256>}, {pipeline_mode = #tpu.pipeline_mode<synchronous>, transform_indices = @transform_4, window_bounds = array<i64: 1, 256>}, {pipeline_mode = #tpu.pipeline_mode<synchronous>, transform_indices = @transform_5, window_bounds = array<i64: 2, 256>}]} {
    %c0 = arith.constant 0 : index
    %c0_0 = arith.constant 0 : index
    %0 = vector.load %arg1[%c0, %c0_0] : memref<2x2048xbf16, #tpu.memory_space<vmem>>, vector<2x2048xbf16>
    %c0_1 = arith.constant 0 : index
    %c0_2 = arith.constant 0 : index
    %1 = vector.load %arg3[%c0_1, %c0_2] : memref<2048x256xbf16, #tpu.memory_space<vmem>>, vector<2048x256xbf16>
    %cst = arith.constant dense<0.000000e+00> : vector<2x256xf32>
    %2 = tpu.matmul %0, %1, %cst {dimension_numbers = #tpu.dot_dimension_numbers<[1], [0], [0], [1], [0, 0, 1, 1], [], []>} : vector<2x2048xbf16>, vector<2048x256xbf16>, vector<2x256xf32> -> vector<2x256xf32>
    %c0_3 = arith.constant 0 : index
    %c0_4 = arith.constant 0 : index
    %3 = vector.load %arg5[%c0_3, %c0_4] : memref<1x256xf32, #tpu.memory_space<vmem>>, vector<1x256xf32>
    %4 = vector.broadcast %3 : vector<1x256xf32> to vector<2x256xf32>
    %5 = arith.addf %2, %4 : vector<2x256xf32>
    %c0_5 = arith.constant 0 : index
    %c0_6 = arith.constant 0 : index
    %6 = vector.load %arg2[%c0_5, %c0_6] : memref<2x256xf32, #tpu.memory_space<vmem>>, vector<2x256xf32>
    %7 = arith.truncf %6 : vector<2x256xf32> to vector<2x256xbf16>
    %c0_7 = arith.constant 0 : index
    %c0_8 = arith.constant 0 : index
    %8 = vector.load %arg4[%c0_7, %c0_8] : memref<256x256xbf16, #tpu.memory_space<vmem>>, vector<256x256xbf16>
    %cst_9 = arith.constant dense<0.000000e+00> : vector<2x256xf32>
    %9 = tpu.matmul %7, %8, %cst_9 {dimension_numbers = #tpu.dot_dimension_numbers<[1], [0], [0], [1], [0, 0, 1, 1], [], []>} : vector<2x256xbf16>, vector<256x256xbf16>, vector<2x256xf32> -> vector<2x256xf32>
    %10 = arith.addf %6, %9 : vector<2x256xf32>
    %11 = arith.addf %10, %5 : vector<2x256xf32>
    %12 = arith.truncf %11 : vector<2x256xf32> to vector<2x256xbf16>
    %c0_10 = arith.constant 0 : index
    %c0_11 = arith.constant 0 : index
    %13 = vector.load %arg4[%c0_10, %c0_11] : memref<256x256xbf16, #tpu.memory_space<vmem>>, vector<256x256xbf16>
    %cst_12 = arith.constant dense<0.000000e+00> : vector<2x256xf32>
    %14 = tpu.matmul %12, %13, %cst_12 {dimension_numbers = #tpu.dot_dimension_numbers<[1], [0], [0], [1], [0, 0, 1, 1], [], []>} : vector<2x256xbf16>, vector<256x256xbf16>, vector<2x256xf32> -> vector<2x256xf32>
    %15 = arith.addf %11, %14 : vector<2x256xf32>
    %16 = arith.addf %15, %5 : vector<2x256xf32>
    %17 = arith.truncf %16 : vector<2x256xf32> to vector<2x256xbf16>
    %c0_13 = arith.constant 0 : index
    %c0_14 = arith.constant 0 : index
    %18 = vector.load %arg4[%c0_13, %c0_14] : memref<256x256xbf16, #tpu.memory_space<vmem>>, vector<256x256xbf16>
    %cst_15 = arith.constant dense<0.000000e+00> : vector<2x256xf32>
    %19 = tpu.matmul %17, %18, %cst_15 {dimension_numbers = #tpu.dot_dimension_numbers<[1], [0], [0], [1], [0, 0, 1, 1], [], []>} : vector<2x256xbf16>, vector<256x256xbf16>, vector<2x256xf32> -> vector<2x256xf32>
    %20 = arith.addf %16, %19 : vector<2x256xf32>
    %21 = arith.addf %20, %5 : vector<2x256xf32>
    %c0_16 = arith.constant 0 : index
    %c0_17 = arith.constant 0 : index
    %22 = vector.load %arg6[%c0_16, %c0_17] : memref<2x256xf32, #tpu.memory_space<vmem>>, vector<2x256xf32>
    tpu.vector_store %arg6[%c0_16, %c0_17], %21 {strides = array<i32>} : memref<2x256xf32, #tpu.memory_space<vmem>>, vector<2x256xf32>,
    return
  }
  func.func @transform_0(%arg0: i32) -> (i32, i32) {
    %c0_i32 = arith.constant 0 : i32
    %c0_i32_0 = arith.constant 0 : i32
    %c0_i32_1 = arith.constant 0 : i32
    return %c0_i32, %c0_i32_0 : i32, i32
  }
  func.func @transform_1(%arg0: i32) -> (i32, i32) {
    %c0_i32 = arith.constant 0 : i32
    %c0_i32_0 = arith.constant 0 : i32
    %c0_i32_1 = arith.constant 0 : i32
    return %c0_i32, %c0_i32_0 : i32, i32
  }
  func.func @transform_2(%arg0: i32) -> (i32, i32) {
    %c0_i32 = arith.constant 0 : i32
    %c0_i32_0 = arith.constant 0 : i32
    %c0_i32_1 = arith.constant 0 : i32
    return %c0_i32, %c0_i32_0 : i32, i32
  }
  func.func @transform_3(%arg0: i32) -> (i32, i32) {
    %c0_i32 = arith.constant 0 : i32
    %c0_i32_0 = arith.constant 0 : i32
    %c0_i32_1 = arith.constant 0 : i32
    return %c0_i32, %c0_i32_0 : i32, i32
  }
  func.func @transform_4(%arg0: i32) -> (i32, i32) {
    %c0_i32 = arith.constant 0 : i32
    %c0_i32_0 = arith.constant 0 : i32
    %c0_i32_1 = arith.constant 0 : i32
    return %c0_i32, %c0_i32_0 : i32, i32
  }
  func.func @transform_5(%arg0: i32) -> (i32, i32) {
    %c0_i32 = arith.constant 0 : i32
    %c0_i32_0 = arith.constant 0 : i32
    %c0_i32_1 = arith.constant 0 : i32
    return %c0_i32, %c0_i32_0 : i32, i32
  }
}

</mosaic_0001>

<llo_original>
// kernel: tpu_custom_call.1
$region0: #{tpu_custom_call.1}
  #allocation0 [shape = 'u32[]', space=smem, size = 0x4, offset = 0x4, fixed_abs, tag = 'smem constant byte address 0x4 - core index']
  #allocation1 [shape = 'u32[144,128]{1,0:T(1,128)}', space=vmem, size = 0x12000, scoped, tag = 'internal scratch']
  %s0 = inlined_call_operand.hbm [shape: bf16[2,2048], index: 0, kind: input, shape index: {}]
  %s1 = inlined_call_operand.hbm [shape: f32[2,256], index: 1, kind: input, shape index: {}]
  %s2 = inlined_call_operand.hbm [shape: bf16[2048,256], index: 2, kind: input, shape index: {}]
  %s3 = inlined_call_operand.hbm [shape: bf16[256,256], index: 3, kind: input, shape index: {}]
  %s4 = inlined_call_operand.vmem [shape: f32[1,256], index: 4, kind: input, shape index: {}]
  %s5 = inlined_call_operand.hbm [shape: f32[2,256], index: 5, kind: output, shape index: {}]
  %s6 = sld [smem:[#allocation0]]
  $region46: #{tpu_custom_call.1} parent=0
    _
  %s8 = ssub.s32 1, %s6
  %s9 = scalar_select 0, %s8, %s6
  $region1: #{tpu_custom_call.1} parent=0
    #allocation2 [shape = 'u8[8192]{0}', space=vmem, size = 0x2000, scoped, tag = 'input window, operand 0, single buffered']
    #allocation3 [shape = 's32[1]{0}', space=sflag, size = 0x4, scoped, tag = 'scoped memory for tpu_custom_call.1']
    #allocation4 [shape = 's32[1]{0}', space=sflag, size = 0x4, scoped, tag = 'scoped memory for tpu_custom_call.1']
    #allocation5 [shape = 'u8[2048]{0}', space=vmem, size = 0x800, scoped, tag = 'input window, operand 1, single buffered']
    #allocation6 [shape = 's32[1]{0}', space=sflag, size = 0x4, scoped, tag = 'scoped memory for tpu_custom_call.1']
    #allocation7 [shape = 'u8[1048576]{0}', space=vmem, size = 0x100000, scoped, tag = 'input window, operand 2, single buffered']
    #allocation8 [shape = 'u8[131072]{0}', space=vmem, size = 0x20000, scoped, tag = 'input window, operand 3, single buffered']
    #allocation9 [shape = 's32[1]{0}', space=sflag, size = 0x4, scoped, tag = 'scoped memory for tpu_custom_call.1']
    #allocation10 [shape = 'u8[2048]{0}', space=vmem, size = 0x800, scoped, tag = 'output window, operand 0, single buffered']
    %10 = vsyncpa [#allocation3], 0
    %11 = vsyncpa [#allocation6], 0
    %12 = vsyncpa [#allocation9], 0
    %13 = vsyncpa [#allocation4], 0
    // Predicated region
    $region2: #{tpu_custom_call.1} parent=1 // pred_check
      _
    $region3: #{tpu_custom_call.1} parent=1 // pred_check_branch
      %15 = sbr.rel (0) target = $region5
    $region4: #{tpu_custom_call.1} parent=1 // pred_region
      %s17 = ssub.s32 256, 256
      %18 = vsyncadd [#allocation3], %s17
      %s20 = sshll.u32 [#allocation2], 4
      %s21 = int_to_ptr.vmem [resolvable:$true] %s20
      %23 = dma.hbm_to_vmem [thread:$0]  %s0, 256, %s21, [#allocation3]
    $region5: #{tpu_custom_call.1} parent=1 // pred_fallthru
      _
    // Predicated region
    $region6: #{tpu_custom_call.1} parent=1 // pred_check
      _
    $region7: #{tpu_custom_call.1} parent=1 // pred_check_branch
      %25 = sbr.rel (0) target = $region9
    $region8: #{tpu_custom_call.1} parent=1 // pred_region
      %s27 = ssub.s32 64, 64
      %28 = vsyncadd [#allocation6], %s27
      %s30 = sshll.u32 [#allocation5], 4
      %s31 = int_to_ptr.vmem [resolvable:$true] %s30
      %33 = dma.hbm_to_vmem [thread:$0]  %s1, 64, %s31, [#allocation6]
    $region9: #{tpu_custom_call.1} parent=1 // pred_fallthru
      _
    // Predicated region
    $region10: #{tpu_custom_call.1} parent=1 // pred_check
      _
    $region11: #{tpu_custom_call.1} parent=1 // pred_check_branch
      %35 = sbr.rel (0) target = $region13
    $region12: #{tpu_custom_call.1} parent=1 // pred_region
      %s37 = ssub.s32 32768, 32768
      %38 = vsyncadd [#allocation6], %s37
      %s39 = sshll.u32 [#allocation7], 4
      %s40 = int_to_ptr.vmem [resolvable:$true] %s39
      %45 = dma.hbm_to_vmem [thread:$0]  %s2, 32768, %s40, [#allocation6], 128, 128, 8
    $region13: #{tpu_custom_call.1} parent=1 // pred_fallthru
      _
    // Predicated region
    $region14: #{tpu_custom_call.1} parent=1 // pred_check
      _
    $region15: #{tpu_custom_call.1} parent=1 // pred_check_branch
      %47 = sbr.rel (0) target = $region17
    $region16: #{tpu_custom_call.1} parent=1 // pred_region
      %s49 = ssub.s32 4096, 4096
      %50 = vsyncadd [#allocation9], %s49
      %s51 = sshll.u32 [#allocation8], 4
      %s52 = int_to_ptr.vmem [resolvable:$true] %s51
      %57 = dma.hbm_to_vmem [thread:$0]  %s3, 4096, %s52, [#allocation9], 128, 128, 8
    $region17: #{tpu_custom_call.1} parent=1 // pred_fallthru
      _
    // Predicated region
    $region18: #{tpu_custom_call.1} parent=1 // pred_check
      _
    $region19: #{tpu_custom_call.1} parent=1 // pred_check_branch
      %59 = sbr.rel (0) target = $region21
    $region20: #{tpu_custom_call.1} parent=1 // pred_region
      _
    $region21: #{tpu_custom_call.1} parent=1 // pred_fallthru
      _
    // Predicated region
    $region22: #{tpu_custom_call.1} parent=1 // pred_check
      _
    $region23: #{tpu_custom_call.1} parent=1 // pred_check_branch
      %61 = sbr.rel (0) target = $region25
    $region24: #{tpu_custom_call.1} parent=1 // pred_region
      %62 = dma.done [#allocation3], 256
    $region25: #{tpu_custom_call.1} parent=1 // pred_fallthru
      _
    // Predicated region
    $region26: #{tpu_custom_call.1} parent=1 // pred_check
      _
    $region27: #{tpu_custom_call.1} parent=1 // pred_check_branch
      %64 = sbr.rel (0) target = $region29
    $region28: #{tpu_custom_call.1} parent=1 // pred_region
      %65 = dma.done [#allocation6], 64
    $region29: #{tpu_custom_call.1} parent=1 // pred_fallthru
      _
    // Predicated region
    $region30: #{tpu_custom_call.1} parent=1 // pred_check
      _
    $region31: #{tpu_custom_call.1} parent=1 // pred_check_branch
      %67 = sbr.rel (0) target = $region33
    $region32: #{tpu_custom_call.1} parent=1 // pred_region
      %68 = dma.done [#allocation6], 32768
    $region33: #{tpu_custom_call.1} parent=1 // pred_fallthru
      _
    // Predicated region
    $region34: #{tpu_custom_call.1} parent=1 // pred_check
      _
    $region35: #{tpu_custom_call.1} parent=1 // pred_check_branch
      %70 = sbr.rel (0) target = $region37
    $region36: #{tpu_custom_call.1} parent=1 // pred_region
      %71 = dma.done [#allocation9], 4096
    $region37: #{tpu_custom_call.1} parent=1 // pred_fallthru
      _
    %v72 = vld [vmem:[#allocation2] sm:$0xff]
    %v73 = vld [vmem:[#allocation2 + $0x8] sm:$0xff]
    %v74 = vld [vmem:[#allocation7] sm:$0xff]
    %v75 = vld [vmem:[#allocation7 + $0x8] sm:$0xff]
    %v76 = vld [vmem:[#allocation7 + $0x10] sm:$0xff]
    %v77 = vld [vmem:[#allocation7 + $0x18] sm:$0xff]
    %v78 = vld [vmem:[#allocation7 + $0x20] sm:$0xff]
    %v79 = vld [vmem:[#allocation7 + $0x28] sm:$0xff]
    %v80 = vld [vmem:[#allocation7 + $0x30] sm:$0xff]
    %v81 = vld [vmem:[#allocation7 + $0x38] sm:$0xff]
    %v82 = vld [vmem:[#allocation7 + $0x40] sm:$0xff]
    %v83 = vld [vmem:[#allocation7 + $0x48] sm:$0xff]
    %v84 = vld [vmem:[#allocation7 + $0x50] sm:$0xff]
    %v85 = vld [vmem:[#allocation7 + $0x58] sm:$0xff]
    %v86 = vld [vmem:[#allocation7 + $0x60] sm:$0xff]
    %v87 = vld [vmem:[#allocation7 + $0x68] sm:$0xff]
    %v88 = vld [vmem:[#allocation7 + $0x70] sm:$0xff]
    %v89 = vld [vmem:[#allocation7 + $0x78] sm:$0xff]
    %v90 = vld [vmem:[#allocation7 + $0x80] sm:$0xff]
    %v91 = vld [vmem:[#allocation7 + $0x88] sm:$0xff]
    %v92 = vld [vmem:[#allocation7 + $0x90] sm:$0xff]
    %v93 = vld [vmem:[#allocation7 + $0x98] sm:$0xff]
    %v94 = vld [vmem:[#allocation7 + $0xa0] sm:$0xff]
    %v95 = vld [vmem:[#allocation7 + $0xa8] sm:$0xff]
    %v96 = vld [vmem:[#allocation7 + $0xb0] sm:$0xff]
    %v97 = vld [vmem:[#allocation7 + $0xb8] sm:$0xff]
    %v98 = vld [vmem:[#allocation7 + $0xc0] sm:$0xff]
    %v99 = vld [vmem:[#allocation7 + $0xc8] sm:$0xff]
    %v100 = vld [vmem:[#allocation7 + $0xd0] sm:$0xff]
    %v101 = vld [vmem:[#allocation7 + $0xd8] sm:$0xff]
    %v102 = vld [vmem:[#allocation7 + $0xe0] sm:$0xff]
    %v103 = vld [vmem:[#allocation7 + $0xe8] sm:$0xff]
    %v104 = vld [vmem:[#allocation7 + $0xf0] sm:$0xff]
    %v105 = vld [vmem:[#allocation7 + $0xf8] sm:$0xff]
    %v106 = vld [vmem:[#allocation7 + $0x100] sm:$0xff]
    %v107 = vld [vmem:[#allocation7 + $0x108] sm:$0xff]
    %v108 = vld [vmem:[#allocation7 + $0x110] sm:$0xff]
    %v109 = vld [vmem:[#allocation7 + $0x118] sm:$0xff]
    %v110 = vld [vmem:[#allocation7 + $0x120] sm:$0xff]
    %v111 = vld [vmem:[#allocation7 + $0x128] sm:$0xff]
    %v112 = vld [vmem:[#allocation7 + $0x130] sm:$0xff]
    %v113 = vld [vmem:[#allocation7 + $0x138] sm:$0xff]
    %v114 = vld [vmem:[#allocation7 + $0x140] sm:$0xff]
    %v115 = vld [vmem:[#allocation7 + $0x148] sm:$0xff]
    %v116 = vld [vmem:[#allocation7 + $0x150] sm:$0xff]
    %v117 = vld [vmem:[#allocation7 + $0x158] sm:$0xff]
    %v118 = vld [vmem:[#allocation7 + $0x160] sm:$0xff]
    %v119 = vld [vmem:[#allocation7 + $0x168] sm:$0xff]
    %v120 = vld [vmem:[#allocation7 + $0x170] sm:$0xff]
    %v121 = vld [vmem:[#allocation7 + $0x178] sm:$0xff]
    %v122 = vld [vmem:[#allocation7 + $0x180] sm:$0xff]
    %v123 = vld [vmem:[#allocation7 + $0x188] sm:$0xff]
    %v124 = vld [vmem:[#allocation7 + $0x190] sm:$0xff]
    %v125 = vld [vmem:[#allocation7 + $0x198] sm:$0xff]
    %v126 = vld [vmem:[#allocation7 + $0x1a0] sm:$0xff]
    %v127 = vld [vmem:[#allocation7 + $0x1a8] sm:$0xff]
    %v128 = vld [vmem:[#allocation7 + $0x1b0] sm:$0xff]
    %v129 = vld [vmem:[#allocation7 + $0x1b8] sm:$0xff]
    %v130 = vld [vmem:[#allocation7 + $0x1c0] sm:$0xff]
    %v131 = vld [vmem:[#allocation7 + $0x1c8] sm:$0xff]
    %v132 = vld [vmem:[#allocation7 + $0x1d0] sm:$0xff]
    %v133 = vld [vmem:[#allocation7 + $0x1d8] sm:$0xff]
    %v134 = vld [vmem:[#allocation7 + $0x1e0] sm:$0xff]
    %v135 = vld [vmem:[#allocation7 + $0x1e8] sm:$0xff]
    %v136 = vld [vmem:[#allocation7 + $0x1f0] sm:$0xff]
    %v137 = vld [vmem:[#allocation7 + $0x1f8] sm:$0xff]
    %v138 = vld [vmem:[#allocation7 + $0x200] sm:$0xff]
    %v139 = vld [vmem:[#allocation7 + $0x208] sm:$0xff]
    %v140 = vld [vmem:[#allocation7 + $0x210] sm:$0xff]
    %v141 = vld [vmem:[#allocation7 + $0x218] sm:$0xff]
    %v142 = vld [vmem:[#allocation7 + $0x220] sm:$0xff]
    %v143 = vld [vmem:[#allocation7 + $0x228] sm:$0xff]
    %v144 = vld [vmem:[#allocation7 + $0x230] sm:$0xff]
    %v145 = vld [vmem:[#allocation7 + $0x238] sm:$0xff]
    %v146 = vld [vmem:[#allocation7 + $0x240] sm:$0xff]
    %v147 = vld [vmem:[#allocation7 + $0x248] sm:$0xff]
    %v148 = vld [vmem:[#allocation7 + $0x250] sm:$0xff]
    %v149 = vld [vmem:[#allocation7 + $0x258] sm:$0xff]
    %v150 = vld [vmem:[#allocation7 + $0x260] sm:$0xff]
    %v151 = vld [vmem:[#allocation7 + $0x268] sm:$0xff]
    %v152 = vld [vmem:[#allocation7 + $0x270] sm:$0xff]
    %v153 = vld [vmem:[#allocation7 + $0x278] sm:$0xff]
    %v154 = vld [vmem:[#allocation7 + $0x280] sm:$0xff]
    %v155 = vld [vmem:[#allocation7 + $0x288] sm:$0xff]
    %v156 = vld [vmem:[#allocation7 + $0x290] sm:$0xff]
    %v157 = vld [vmem:[#allocation7 + $0x298] sm:$0xff]
    %v158 = vld [vmem:[#allocation7 + $0x2a0] sm:$0xff]
    %v159 = vld [vmem:[#allocation7 + $0x2a8] sm:$0xff]
    %v160 = vld [vmem:[#allocation7 + $0x2b0] sm:$0xff]
    %v161 = vld [vmem:[#allocation7 + $0x2b8] sm:$0xff]
    %v162 = vld [vmem:[#allocation7 + $0x2c0] sm:$0xff]
    %v163 = vld [vmem:[#allocation7 + $0x2c8] sm:$0xff]
    %v164 = vld [vmem:[#allocation7 + $0x2d0] sm:$0xff]
    %v165 = vld [vmem:[#allocation7 + $0x2d8] sm:$0xff]
    %v166 = vld [vmem:[#allocation7 + $0x2e0] sm:$0xff]
    %v167 = vld [vmem:[#allocation7 + $0x2e8] sm:$0xff]
    %v168 = vld [vmem:[#allocation7 + $0x2f0] sm:$0xff]
    %v169 = vld [vmem:[#allocation7 + $0x2f8] sm:$0xff]
    %v170 = vld [vmem:[#allocation7 + $0x300] sm:$0xff]
    %v171 = vld [vmem:[#allocation7 + $0x308] sm:$0xff]
    %v172 = vld [vmem:[#allocation7 + $0x310] sm:$0xff]
    %v173 = vld [vmem:[#allocation7 + $0x318] sm:$0xff]
    %v174 = vld [vmem:[#allocation7 + $0x320] sm:$0xff]
    %v175 = vld [vmem:[#allocation7 + $0x328] sm:$0xff]
    %v176 = vld [vmem:[#allocation7 + $0x330] sm:$0xff]
    %v177 = vld [vmem:[#allocation7 + $0x338] sm:$0xff]
    %v178 = vld [vmem:[#allocation7 + $0x340] sm:$0xff]
    %v179 = vld [vmem:[#allocation7 + $0x348] sm:$0xff]
    %v180 = vld [vmem:[#allocation7 + $0x350] sm:$0xff]
    %v181 = vld [vmem:[#allocation7 + $0x358] sm:$0xff]
    %v182 = vld [vmem:[#allocation7 + $0x360] sm:$0xff]
    %v183 = vld [vmem:[#allocation7 + $0x368] sm:$0xff]
    %v184 = vld [vmem:[#allocation7 + $0x370] sm:$0xff]
    %v185 = vld [vmem:[#allocation7 + $0x378] sm:$0xff]
    %v186 = vld [vmem:[#allocation7 + $0x380] sm:$0xff]
    %v187 = vld [vmem:[#allocation7 + $0x388] sm:$0xff]
    %v188 = vld [vmem:[#allocation7 + $0x390] sm:$0xff]
    %v189 = vld [vmem:[#allocation7 + $0x398] sm:$0xff]
    %v190 = vld [vmem:[#allocation7 + $0x3a0] sm:$0xff]
    %v191 = vld [vmem:[#allocation7 + $0x3a8] sm:$0xff]
    %v192 = vld [vmem:[#allocation7 + $0x3b0] sm:$0xff]
    %v193 = vld [vmem:[#allocation7 + $0x3b8] sm:$0xff]
    %v194 = vld [vmem:[#allocation7 + $0x3c0] sm:$0xff]
    %v195 = vld [vmem:[#allocation7 + $0x3c8] sm:$0xff]
    %v196 = vld [vmem:[#allocation7 + $0x3d0] sm:$0xff]
    %v197 = vld [vmem:[#allocation7 + $0x3d8] sm:$0xff]
    %v198 = vld [vmem:[#allocation7 + $0x3e0] sm:$0xff]
    %v199 = vld [vmem:[#allocation7 + $0x3e8] sm:$0xff]
    %v200 = vld [vmem:[#allocation7 + $0x3f0] sm:$0xff]
    %v201 = vld [vmem:[#allocation7 + $0x3f8] sm:$0xff]
    %v202 = vld [vmem:[#allocation7 + $0x400] sm:$0xff]
    %v203 = vld [vmem:[#allocation7 + $0x408] sm:$0xff]
    %v204 = vld [vmem:[#allocation7 + $0x410] sm:$0xff]
    %v205 = vld [vmem:[#allocation7 + $0x418] sm:$0xff]
    %v206 = vld [vmem:[#allocation7 + $0x420] sm:$0xff]
    %v207 = vld [vmem:[#allocation7 + $0x428] sm:$0xff]
    %v208 = vld [vmem:[#allocation7 + $0x430] sm:$0xff]
    %v209 = vld [vmem:[#allocation7 + $0x438] sm:$0xff]
    %v210 = vld [vmem:[#allocation7 + $0x440] sm:$0xff]
    %v211 = vld [vmem:[#allocation7 + $0x448] sm:$0xff]
    %v212 = vld [vmem:[#allocation7 + $0x450] sm:$0xff]
    %v213 = vld [vmem:[#allocation7 + $0x458] sm:$0xff]
    %v214 = vld [vmem:[#allocation7 + $0x460] sm:$0xff]
    %v215 = vld [vmem:[#allocation7 + $0x468] sm:$0xff]
    %v216 = vld [vmem:[#allocation7 + $0x470] sm:$0xff]
    %v217 = vld [vmem:[#allocation7 + $0x478] sm:$0xff]
    %v218 = vld [vmem:[#allocation7 + $0x480] sm:$0xff]
    %v219 = vld [vmem:[#allocation7 + $0x488] sm:$0xff]
    %v220 = vld [vmem:[#allocation7 + $0x490] sm:$0xff]
    %v221 = vld [vmem:[#allocation7 + $0x498] sm:$0xff]
    %v222 = vld [vmem:[#allocation7 + $0x4a0] sm:$0xff]
    %v223 = vld [vmem:[#allocation7 + $0x4a8] sm:$0xff]
    %v224 = vld [vmem:[#allocation7 + $0x4b0] sm:$0xff]
    %v225 = vld [vmem:[#allocation7 + $0x4b8] sm:$0xff]
    %v226 = vld [vmem:[#allocation7 + $0x4c0] sm:$0xff]
    %v227 = vld [vmem:[#allocation7 + $0x4c8] sm:$0xff]
    %v228 = vld [vmem:[#allocation7 + $0x4d0] sm:$0xff]
    %v229 = vld [vmem:[#allocation7 + $0x4d8] sm:$0xff]
    %v230 = vld [vmem:[#allocation7 + $0x4e0] sm:$0xff]
    %v231 = vld [vmem:[#allocation7 + $0x4e8] sm:$0xff]
    %v232 = vld [vmem:[#allocation7 + $0x4f0] sm:$0xff]
    %v233 = vld [vmem:[#allocation7 + $0x4f8] sm:$0xff]
    %v234 = vld [vmem:[#allocation7 + $0x500] sm:$0xff]
    %v235 = vld [vmem:[#allocation7 + $0x508] sm:$0xff]
    %v236 = vld [vmem:[#allocation7 + $0x510] sm:$0xff]
    %v237 = vld [vmem:[#allocation7 + $0x518] sm:$0xff]
    %v238 = vld [vmem:[#allocation7 + $0x520] sm:$0xff]
    %v239 = vld [vmem:[#allocation7 + $0x528] sm:$0xff]
    %v240 = vld [vmem:[#allocation7 + $0x530] sm:$0xff]
    %v241 = vld [vmem:[#allocation7 + $0x538] sm:$0xff]
    %v242 = vld [vmem:[#allocation7 + $0x540] sm:$0xff]
    %v243 = vld [vmem:[#allocation7 + $0x548] sm:$0xff]
    %v244 = vld [vmem:[#allocation7 + $0x550] sm:$0xff]
    %v245 = vld [vmem:[#allocation7 + $0x558] sm:$0xff]
    %v246 = vld [vmem:[#allocation7 + $0x560] sm:$0xff]
    %v247 = vld [vmem:[#allocation7 + $0x568] sm:$0xff]
    %v248 = vld [vmem:[#allocation7 + $0x570] sm:$0xff]
    %v249 = vld [vmem:[#allocation7 + $0x578] sm:$0xff]
    %v250 = vld [vmem:[#allocation7 + $0x580] sm:$0xff]
    %v251 = vld [vmem:[#allocation7 + $0x588] sm:$0xff]
    %v252 = vld [vmem:[#allocation7 + $0x590] sm:$0xff]
    %v253 = vld [vmem:[#allocation7 + $0x598] sm:$0xff]
    %v254 = vld [vmem:[#allocation7 + $0x5a0] sm:$0xff]
    %v255 = vld [vmem:[#allocation7 + $0x5a8] sm:$0xff]
    %v256 = vld [vmem:[#allocation7 + $0x5b0] sm:$0xff]
    %v257 = vld [vmem:[#allocation7 + $0x5b8] sm:$0xff]
    %v258 = vld [vmem:[#allocation7 + $0x5c0] sm:$0xff]
    %v259 = vld [vmem:[#allocation7 + $0x5c8] sm:$0xff]
    %v260 = vld [vmem:[#allocation7 + $0x5d0] sm:$0xff]
    %v261 = vld [vmem:[#allocation7 + $0x5d8] sm:$0xff]
    %v262 = vld [vmem:[#allocation7 + $0x5e0] sm:$0xff]
    %v263 = vld [vmem:[#allocation7 + $0x5e8] sm:$0xff]
    %v264 = vld [vmem:[#allocation7 + $0x5f0] sm:$0xff]
    %v265 = vld [vmem:[#allocation7 + $0x5f8] sm:$0xff]
    %v266 = vld [vmem:[#allocation7 + $0x600] sm:$0xff]
    %v267 = vld [vmem:[#allocation7 + $0x608] sm:$0xff]
    %v268 = vld [vmem:[#allocation7 + $0x610] sm:$0xff]
    %v269 = vld [vmem:[#allocation7 + $0x618] sm:$0xff]
    %v270 = vld [vmem:[#allocation7 + $0x620] sm:$0xff]
    %v271 = vld [vmem:[#allocation7 + $0x628] sm:$0xff]
    %v272 = vld [vmem:[#allocation7 + $0x630] sm:$0xff]
    %v273 = vld [vmem:[#allocation7 + $0x638] sm:$0xff]
    %v274 = vld [vmem:[#allocation7 + $0x640] sm:$0xff]
    %v275 = vld [vmem:[#allocation7 + $0x648] sm:$0xff]
    %v276 = vld [vmem:[#allocation7 + $0x650] sm:$0xff]
    %v277 = vld [vmem:[#allocation7 + $0x658] sm:$0xff]
    %v278 = vld [vmem:[#allocation7 + $0x660] sm:$0xff]
    %v279 = vld [vmem:[#allocation7 + $0x668] sm:$0xff]
    %v280 = vld [vmem:[#allocation7 + $0x670] sm:$0xff]
    %v281 = vld [vmem:[#allocation7 + $0x678] sm:$0xff]
    %v282 = vld [vmem:[#allocation7 + $0x680] sm:$0xff]
    %v283 = vld [vmem:[#allocation7 + $0x688] sm:$0xff]
    %v284 = vld [vmem:[#allocation7 + $0x690] sm:$0xff]
    %v285 = vld [vmem:[#allocation7 + $0x698] sm:$0xff]
    %v286 = vld [vmem:[#allocation7 + $0x6a0] sm:$0xff]
    %v287 = vld [vmem:[#allocation7 + $0x6a8] sm:$0xff]
    %v288 = vld [vmem:[#allocation7 + $0x6b0] sm:$0xff]
    %v289 = vld [vmem:[#allocation7 + $0x6b8] sm:$0xff]
    %v290 = vld [vmem:[#allocation7 + $0x6c0] sm:$0xff]
    %v291 = vld [vmem:[#allocation7 + $0x6c8] sm:$0xff]
    %v292 = vld [vmem:[#allocation7 + $0x6d0] sm:$0xff]
    %v293 = vld [vmem:[#allocation7 + $0x6d8] sm:$0xff]
    %v294 = vld [vmem:[#allocation7 + $0x6e0] sm:$0xff]
    %v295 = vld [vmem:[#allocation7 + $0x6e8] sm:$0xff]
    %v296 = vld [vmem:[#allocation7 + $0x6f0] sm:$0xff]
    %v297 = vld [vmem:[#allocation7 + $0x6f8] sm:$0xff]
    %v298 = vld [vmem:[#allocation7 + $0x700] sm:$0xff]
    %v299 = vld [vmem:[#allocation7 + $0x708] sm:$0xff]
    %v300 = vld [vmem:[#allocation7 + $0x710] sm:$0xff]
    %v301 = vld [vmem:[#allocation7 + $0x718] sm:$0xff]
    %v302 = vld [vmem:[#allocation7 + $0x720] sm:$0xff]
    %v303 = vld [vmem:[#allocation7 + $0x728] sm:$0xff]
    %v304 = vld [vmem:[#allocation7 + $0x730] sm:$0xff]
    %v305 = vld [vmem:[#allocation7 + $0x738] sm:$0xff]
    %v306 = vld [vmem:[#allocation7 + $0x740] sm:$0xff]
    %v307 = vld [vmem:[#allocation7 + $0x748] sm:$0xff]
    %v308 = vld [vmem:[#allocation7 + $0x750] sm:$0xff]
    %v309 = vld [vmem:[#allocation7 + $0x758] sm:$0xff]
    %v310 = vld [vmem:[#allocation7 + $0x760] sm:$0xff]
    %v311 = vld [vmem:[#allocation7 + $0x768] sm:$0xff]
    %v312 = vld [vmem:[#allocation7 + $0x770] sm:$0xff]
    %v313 = vld [vmem:[#allocation7 + $0x778] sm:$0xff]
    %v314 = vld [vmem:[#allocation7 + $0x780] sm:$0xff]
    %v315 = vld [vmem:[#allocation7 + $0x788] sm:$0xff]
    %v316 = vld [vmem:[#allocation7 + $0x790] sm:$0xff]
    %v317 = vld [vmem:[#allocation7 + $0x798] sm:$0xff]
    %v318 = vld [vmem:[#allocation7 + $0x7a0] sm:$0xff]
    %v319 = vld [vmem:[#allocation7 + $0x7a8] sm:$0xff]
    %v320 = vld [vmem:[#allocation7 + $0x7b0] sm:$0xff]
    %v321 = vld [vmem:[#allocation7 + $0x7b8] sm:$0xff]
    %v322 = vld [vmem:[#allocation7 + $0x7c0] sm:$0xff]
    %v323 = vld [vmem:[#allocation7 + $0x7c8] sm:$0xff]
    %v324 = vld [vmem:[#allocation7 + $0x7d0] sm:$0xff]
    %v325 = vld [vmem:[#allocation7 + $0x7d8] sm:$0xff]
    %v326 = vld [vmem:[#allocation7 + $0x7e0] sm:$0xff]
    %v327 = vld [vmem:[#allocation7 + $0x7e8] sm:$0xff]
    %v328 = vld [vmem:[#allocation7 + $0x7f0] sm:$0xff]
    %v329 = vld [vmem:[#allocation7 + $0x7f8] sm:$0xff]
    %v330 = vld [vmem:[%s4] sm:$0x3]
    %v332 = vlaneseq
    %v333 = vshrl.u32 %v332, 7
    %v334 = vsub.s32 0, %v333
    %v335 = vrot.slane %v330, %v334
    %v336 = vlaneseq
    %v337 = vshrl.u32 %v336, 7
    %v338 = vsub.s32 1, %v337
    %v339 = vrot.slane %v330, %v338
    %v344 = vcombine.high %v72, %v72
    %v346 = vunpack.c.l.s4 1966171168
    %v347 = vunpack.c.0.s8 %v346
    %v348 = vlaneseq
    %v349 = vshrl.u32 %v348, 7
    %v350 = vsub.s32 %v347, %v349
    %v351 = vrot.slane %v72, %v350
    %v353 = vunpack.c.l.s4 1966171168
    %v354 = vunpack.c.0.s8 %v353
    %v355 = vlaneseq
    %v356 = vshrl.u32 %v355, 7
    %v357 = vsub.s32 %v354, %v356
    %v358 = vrot.slane %v344, %v357
    %v359 = vcombine.high %v351, %v351
    %v360 = vcombine.high %v358, %v358
    %v362 = vunpack.c.l.s4 1966171168
    %v363 = vunpack.c.0.s8 %v362
    %v364 = vlaneseq
    %v365 = vshrl.u32 %v364, 7
    %v366 = vsub.s32 %v363, %v365
    %v367 = vrot.slane %v351, %v366
    %v369 = vunpack.c.l.s4 1966171168
    %v370 = vunpack.c.0.s8 %v369
    %v371 = vlaneseq
    %v372 = vshrl.u32 %v371, 7
    %v373 = vsub.s32 %v370, %v372
    %v374 = vrot.slane %v358, %v373
    %v376 = vunpack.c.l.s4 1966171168
    %v377 = vunpack.c.0.s8 %v376
    %v378 = vlaneseq
    %v379 = vshrl.u32 %v378, 7
    %v380 = vsub.s32 %v377, %v379
    %v381 = vrot.slane %v359, %v380
    %v383 = vunpack.c.l.s4 1966171168
    %v384 = vunpack.c.0.s8 %v383
    %v385 = vlaneseq
    %v386 = vshrl.u32 %v385, 7
    %v387 = vsub.s32 %v384, %v386
    %v388 = vrot.slane %v360, %v387
    %v389 = vcombine.high %v367, %v367
    %v390 = vcombine.high %v374, %v374
    %v391 = vcombine.high %v381, %v381
    %v392 = vcombine.high %v388, %v388
    %v393 = vcombine.high %v73, %v73
    %v395 = vunpack.c.l.s4 1966171168
    %v396 = vunpack.c.0.s8 %v395
    %v397 = vlaneseq
    %v398 = vshrl.u32 %v397, 7
    %v399 = vsub.s32 %v396, %v398
    %v400 = vrot.slane %v73, %v399
    %v402 = vunpack.c.l.s4 1966171168
    %v403 = vunpack.c.0.s8 %v402
    %v404 = vlaneseq
    %v405 = vshrl.u32 %v404, 7
    %v406 = vsub.s32 %v403, %v405
    %v407 = vrot.slane %v393, %v406
    %v408 = vcombine.high %v400, %v400
    %v409 = vcombine.high %v407, %v407
    %v411 = vunpack.c.l.s4 1966171168
    %v412 = vunpack.c.0.s8 %v411
    %v413 = vlaneseq
    %v414 = vshrl.u32 %v413, 7
    %v415 = vsub.s32 %v412, %v414
    %v416 = vrot.slane %v400, %v415
    %v418 = vunpack.c.l.s4 1966171168
    %v419 = vunpack.c.0.s8 %v418
    %v420 = vlaneseq
    %v421 = vshrl.u32 %v420, 7
    %v422 = vsub.s32 %v419, %v421
    %v423 = vrot.slane %v407, %v422
    %v425 = vunpack.c.l.s4 1966171168
    %v426 = vunpack.c.0.s8 %v425
    %v427 = vlaneseq
    %v428 = vshrl.u32 %v427, 7
    %v429 = vsub.s32 %v426, %v428
    %v430 = vrot.slane %v408, %v429
    %v432 = vunpack.c.l.s4 1966171168
    %v433 = vunpack.c.0.s8 %v432
    %v434 = vlaneseq
    %v435 = vshrl.u32 %v434, 7
    %v436 = vsub.s32 %v433, %v435
    %v437 = vrot.slane %v409, %v436
    %v438 = vcombine.high %v416, %v416
    %v439 = vcombine.high %v423, %v423
    %v440 = vcombine.high %v430, %v430
    %v441 = vcombine.high %v437, %v437
    %v714 = vunpack.c.l.b16 %v74
    %v715 = vunpack.c.h.b16 %v74
    %v716 = vunpack.c.l.b16 %v75
    %v717 = vunpack.c.h.b16 %v75
    %v718 = vunpack.c.l.b16 %v76
    %v719 = vunpack.c.h.b16 %v76
    %v720 = vunpack.c.l.b16 %v77
    %v721 = vunpack.c.h.b16 %v77
    %v722 = vunpack.c.l.b16 %v78
    %v723 = vunpack.c.h.b16 %v78
    %v724 = vunpack.c.l.b16 %v79
    %v725 = vunpack.c.h.b16 %v79
    %v726 = vunpack.c.l.b16 %v80
    %v727 = vunpack.c.h.b16 %v80
    %v728 = vunpack.c.l.b16 %v81
    %v729 = vunpack.c.h.b16 %v81
    %v730 = vunpack.c.l.b16 %v82
    %v731 = vunpack.c.h.b16 %v82
    %v732 = vunpack.c.l.b16 %v83
    %v733 = vunpack.c.h.b16 %v83
    %v734 = vunpack.c.l.b16 %v84
    %v735 = vunpack.c.h.b16 %v84
    %v736 = vunpack.c.l.b16 %v85
    %v737 = vunpack.c.h.b16 %v85
    %v738 = vunpack.c.l.b16 %v86
    %v739 = vunpack.c.h.b16 %v86
    %v740 = vunpack.c.l.b16 %v87
    %v741 = vunpack.c.h.b16 %v87
    %v742 = vunpack.c.l.b16 %v88
    %v743 = vunpack.c.h.b16 %v88
    %v744 = vunpack.c.l.b16 %v89
    %v745 = vunpack.c.h.b16 %v89
    %v746 = vunpack.c.l.b16 %v90
    %v747 = vunpack.c.h.b16 %v90
    %v748 = vunpack.c.l.b16 %v91
    %v749 = vunpack.c.h.b16 %v91
    %v750 = vunpack.c.l.b16 %v92
    %v751 = vunpack.c.h.b16 %v92
    %v752 = vunpack.c.l.b16 %v93
    %v753 = vunpack.c.h.b16 %v93
    %v754 = vunpack.c.l.b16 %v94
    %v755 = vunpack.c.h.b16 %v94
    %v756 = vunpack.c.l.b16 %v95
    %v757 = vunpack.c.h.b16 %v95
    %v758 = vunpack.c.l.b16 %v96
    %v759 = vunpack.c.h.b16 %v96
    %v760 = vunpack.c.l.b16 %v97
    %v761 = vunpack.c.h.b16 %v97
    %v762 = vunpack.c.l.b16 %v98
    %v763 = vunpack.c.h.b16 %v98
    %v764 = vunpack.c.l.b16 %v99
    %v765 = vunpack.c.h.b16 %v99
    %v766 = vunpack.c.l.b16 %v100
    %v767 = vunpack.c.h.b16 %v100
    %v768 = vunpack.c.l.b16 %v101
    %v769 = vunpack.c.h.b16 %v101
    %v770 = vunpack.c.l.b16 %v102
    %v771 = vunpack.c.h.b16 %v102
    %v772 = vunpack.c.l.b16 %v103
    %v773 = vunpack.c.h.b16 %v103
    %v774 = vunpack.c.l.b16 %v104
    %v775 = vunpack.c.h.b16 %v104
    %v776 = vunpack.c.l.b16 %v105
    %v777 = vunpack.c.h.b16 %v105
    %v778 = vunpack.c.l.b16 %v106
    %v779 = vunpack.c.h.b16 %v106
    %v780 = vunpack.c.l.b16 %v107
    %v781 = vunpack.c.h.b16 %v107
    %v782 = vunpack.c.l.b16 %v108
    %v783 = vunpack.c.h.b16 %v108
    %v784 = vunpack.c.l.b16 %v109
    %v785 = vunpack.c.h.b16 %v109
    %v786 = vunpack.c.l.b16 %v110
    %v787 = vunpack.c.h.b16 %v110
    %v788 = vunpack.c.l.b16 %v111
    %v789 = vunpack.c.h.b16 %v111
    %v790 = vunpack.c.l.b16 %v112
    %v791 = vunpack.c.h.b16 %v112
    %v792 = vunpack.c.l.b16 %v113
    %v793 = vunpack.c.h.b16 %v113
    %v794 = vunpack.c.l.b16 %v114
    %v795 = vunpack.c.h.b16 %v114
    %v796 = vunpack.c.l.b16 %v115
    %v797 = vunpack.c.h.b16 %v115
    %v798 = vunpack.c.l.b16 %v116
    %v799 = vunpack.c.h.b16 %v116
    %v800 = vunpack.c.l.b16 %v117
    %v801 = vunpack.c.h.b16 %v117
    %v802 = vunpack.c.l.b16 %v118
    %v803 = vunpack.c.h.b16 %v118
    %v804 = vunpack.c.l.b16 %v119
    %v805 = vunpack.c.h.b16 %v119
    %v806 = vunpack.c.l.b16 %v120
    %v807 = vunpack.c.h.b16 %v120
    %v808 = vunpack.c.l.b16 %v121
    %v809 = vunpack.c.h.b16 %v121
    %v810 = vunpack.c.l.b16 %v122
    %v811 = vunpack.c.h.b16 %v122
    %v812 = vunpack.c.l.b16 %v123
    %v813 = vunpack.c.h.b16 %v123
    %v814 = vunpack.c.l.b16 %v124
    %v815 = vunpack.c.h.b16 %v124
    %v816 = vunpack.c.l.b16 %v125
    %v817 = vunpack.c.h.b16 %v125
    %v818 = vunpack.c.l.b16 %v126
    %v819 = vunpack.c.h.b16 %v126
    %v820 = vunpack.c.l.b16 %v127
    %v821 = vunpack.c.h.b16 %v127
    %v822 = vunpack.c.l.b16 %v128
    %v823 = vunpack.c.h.b16 %v128
    %v824 = vunpack.c.l.b16 %v129
    %v825 = vunpack.c.h.b16 %v129
    %v826 = vunpack.c.l.b16 %v130
    %v827 = vunpack.c.h.b16 %v130
    %v828 = vunpack.c.l.b16 %v131
    %v829 = vunpack.c.h.b16 %v131
    %v830 = vunpack.c.l.b16 %v132
    %v831 = vunpack.c.h.b16 %v132
    %v832 = vunpack.c.l.b16 %v133
    %v833 = vunpack.c.h.b16 %v133
    %v834 = vunpack.c.l.b16 %v134
    %v835 = vunpack.c.h.b16 %v134
    %v836 = vunpack.c.l.b16 %v135
    %v837 = vunpack.c.h.b16 %v135
    %v838 = vunpack.c.l.b16 %v136
    %v839 = vunpack.c.h.b16 %v136
    %v840 = vunpack.c.l.b16 %v137
    %v841 = vunpack.c.h.b16 %v137
    %v842 = vunpack.c.l.b16 %v138
    %v843 = vunpack.c.h.b16 %v138
    %v844 = vunpack.c.l.b16 %v139
    %v845 = vunpack.c.h.b16 %v139
    %v846 = vunpack.c.l.b16 %v140
    %v847 = vunpack.c.h.b16 %v140
    %v848 = vunpack.c.l.b16 %v141
    %v849 = vunpack.c.h.b16 %v141
    %v850 = vunpack.c.l.b16 %v142
    %v851 = vunpack.c.h.b16 %v142
    %v852 = vunpack.c.l.b16 %v143
    %v853 = vunpack.c.h.b16 %v143
    %v854 = vunpack.c.l.b16 %v144
    %v855 = vunpack.c.h.b16 %v144
    %v856 = vunpack.c.l.b16 %v145
    %v857 = vunpack.c.h.b16 %v145
    %v858 = vunpack.c.l.b16 %v146
    %v859 = vunpack.c.h.b16 %v146
    %v860 = vunpack.c.l.b16 %v147
    %v861 = vunpack.c.h.b16 %v147
    %v862 = vunpack.c.l.b16 %v148
    %v863 = vunpack.c.h.b16 %v148
    %v864 = vunpack.c.l.b16 %v149
    %v865 = vunpack.c.h.b16 %v149
    %v866 = vunpack.c.l.b16 %v150
    %v867 = vunpack.c.h.b16 %v150
    %v868 = vunpack.c.l.b16 %v151
    %v869 = vunpack.c.h.b16 %v151
    %v870 = vunpack.c.l.b16 %v152
    %v871 = vunpack.c.h.b16 %v152
    %v872 = vunpack.c.l.b16 %v153
    %v873 = vunpack.c.h.b16 %v153
    %v874 = vunpack.c.l.b16 %v154
    %v875 = vunpack.c.h.b16 %v154
    %v876 = vunpack.c.l.b16 %v155
    %v877 = vunpack.c.h.b16 %v155
    %v878 = vunpack.c.l.b16 %v156
    %v879 = vunpack.c.h.b16 %v156
    %v880 = vunpack.c.l.b16 %v157
    %v881 = vunpack.c.h.b16 %v157
    %v882 = vunpack.c.l.b16 %v158
    %v883 = vunpack.c.h.b16 %v158
    %v884 = vunpack.c.l.b16 %v159
    %v885 = vunpack.c.h.b16 %v159
    %v886 = vunpack.c.l.b16 %v160
    %v887 = vunpack.c.h.b16 %v160
    %v888 = vunpack.c.l.b16 %v161
    %v889 = vunpack.c.h.b16 %v161
    %v890 = vunpack.c.l.b16 %v162
    %v891 = vunpack.c.h.b16 %v162
    %v892 = vunpack.c.l.b16 %v163
    %v893 = vunpack.c.h.b16 %v163
    %v894 = vunpack.c.l.b16 %v164
    %v895 = vunpack.c.h.b16 %v164
    %v896 = vunpack.c.l.b16 %v165
    %v897 = vunpack.c.h.b16 %v165
    %v898 = vunpack.c.l.b16 %v166
    %v899 = vunpack.c.h.b16 %v166
    %v900 = vunpack.c.l.b16 %v167
    %v901 = vunpack.c.h.b16 %v167
    %v902 = vunpack.c.l.b16 %v168
    %v903 = vunpack.c.h.b16 %v168
    %v904 = vunpack.c.l.b16 %v169
    %v905 = vunpack.c.h.b16 %v169
    %v906 = vunpack.c.l.b16 %v170
    %v907 = vunpack.c.h.b16 %v170
    %v908 = vunpack.c.l.b16 %v171
    %v909 = vunpack.c.h.b16 %v171
    %v910 = vunpack.c.l.b16 %v172
    %v911 = vunpack.c.h.b16 %v172
    %v912 = vunpack.c.l.b16 %v173
    %v913 = vunpack.c.h.b16 %v173
    %v914 = vunpack.c.l.b16 %v174
    %v915 = vunpack.c.h.b16 %v174
    %v916 = vunpack.c.l.b16 %v175
    %v917 = vunpack.c.h.b16 %v175
    %v918 = vunpack.c.l.b16 %v176
    %v919 = vunpack.c.h.b16 %v176
    %v920 = vunpack.c.l.b16 %v177
    %v921 = vunpack.c.h.b16 %v177
    %v922 = vunpack.c.l.b16 %v178
    %v923 = vunpack.c.h.b16 %v178
    %v924 = vunpack.c.l.b16 %v179
    %v925 = vunpack.c.h.b16 %v179
    %v926 = vunpack.c.l.b16 %v180
    %v927 = vunpack.c.h.b16 %v180
    %v928 = vunpack.c.l.b16 %v181
    %v929 = vunpack.c.h.b16 %v181
    %v930 = vunpack.c.l.b16 %v182
    %v931 = vunpack.c.h.b16 %v182
    %v932 = vunpack.c.l.b16 %v183
    %v933 = vunpack.c.h.b16 %v183
    %v934 = vunpack.c.l.b16 %v184
    %v935 = vunpack.c.h.b16 %v184
    %v936 = vunpack.c.l.b16 %v185
    %v937 = vunpack.c.h.b16 %v185
    %v938 = vunpack.c.l.b16 %v186
    %v939 = vunpack.c.h.b16 %v186
    %v940 = vunpack.c.l.b16 %v187
    %v941 = vunpack.c.h.b16 %v187
    %v942 = vunpack.c.l.b16 %v188
    %v943 = vunpack.c.h.b16 %v188
    %v944 = vunpack.c.l.b16 %v189
    %v945 = vunpack.c.h.b16 %v189
    %v946 = vunpack.c.l.b16 %v190
    %v947 = vunpack.c.h.b16 %v190
    %v948 = vunpack.c.l.b16 %v191
    %v949 = vunpack.c.h.b16 %v191
    %v950 = vunpack.c.l.b16 %v192
    %v951 = vunpack.c.h.b16 %v192
    %v952 = vunpack.c.l.b16 %v193
    %v953 = vunpack.c.h.b16 %v193
    %v954 = vunpack.c.l.b16 %v194
    %v955 = vunpack.c.h.b16 %v194
    %v956 = vunpack.c.l.b16 %v195
    %v957 = vunpack.c.h.b16 %v195
    %v958 = vunpack.c.l.b16 %v196
    %v959 = vunpack.c.h.b16 %v196
    %v960 = vunpack.c.l.b16 %v197
    %v961 = vunpack.c.h.b16 %v197
    %v962 = vunpack.c.l.b16 %v198
    %v963 = vunpack.c.h.b16 %v198
    %v964 = vunpack.c.l.b16 %v199
    %v965 = vunpack.c.h.b16 %v199
    %v966 = vunpack.c.l.b16 %v200
    %v967 = vunpack.c.h.b16 %v200
    %v968 = vunpack.c.l.b16 %v201
    %v969 = vunpack.c.h.b16 %v201
    %v970 = vunpack.c.l.b16 %v202
    %v971 = vunpack.c.h.b16 %v202
    %v972 = vunpack.c.l.b16 %v203
    %v973 = vunpack.c.h.b16 %v203
    %v974 = vunpack.c.l.b16 %v204
    %v975 = vunpack.c.h.b16 %v204
    %v976 = vunpack.c.l.b16 %v205
    %v977 = vunpack.c.h.b16 %v205
    %v978 = vunpack.c.l.b16 %v206
    %v979 = vunpack.c.h.b16 %v206
    %v980 = vunpack.c.l.b16 %v207
    %v981 = vunpack.c.h.b16 %v207
    %v982 = vunpack.c.l.b16 %v208
    %v983 = vunpack.c.h.b16 %v208
    %v984 = vunpack.c.l.b16 %v209
    %v985 = vunpack.c.h.b16 %v209
    %v986 = vunpack.c.l.b16 %v210
    %v987 = vunpack.c.h.b16 %v210
    %v988 = vunpack.c.l.b16 %v211
    %v989 = vunpack.c.h.b16 %v211
    %v990 = vunpack.c.l.b16 %v212
    %v991 = vunpack.c.h.b16 %v212
    %v992 = vunpack.c.l.b16 %v213
    %v993 = vunpack.c.h.b16 %v213
    %v994 = vunpack.c.l.b16 %v214
    %v995 = vunpack.c.h.b16 %v214
    %v996 = vunpack.c.l.b16 %v215
    %v997 = vunpack.c.h.b16 %v215
    %v998 = vunpack.c.l.b16 %v216
    %v999 = vunpack.c.h.b16 %v216
    %v1000 = vunpack.c.l.b16 %v217
    %v1001 = vunpack.c.h.b16 %v217
    %v1002 = vunpack.c.l.b16 %v218
    %v1003 = vunpack.c.h.b16 %v218
    %v1004 = vunpack.c.l.b16 %v219
    %v1005 = vunpack.c.h.b16 %v219
    %v1006 = vunpack.c.l.b16 %v220
    %v1007 = vunpack.c.h.b16 %v220
    %v1008 = vunpack.c.l.b16 %v221
    %v1009 = vunpack.c.h.b16 %v221
    %v1010 = vunpack.c.l.b16 %v222
    %v1011 = vunpack.c.h.b16 %v222
    %v1012 = vunpack.c.l.b16 %v223
    %v1013 = vunpack.c.h.b16 %v223
    %v1014 = vunpack.c.l.b16 %v224
    %v1015 = vunpack.c.h.b16 %v224
    %v1016 = vunpack.c.l.b16 %v225
    %v1017 = vunpack.c.h.b16 %v225
    %v1018 = vunpack.c.l.b16 %v226
    %v1019 = vunpack.c.h.b16 %v226
    %v1020 = vunpack.c.l.b16 %v227
    %v1021 = vunpack.c.h.b16 %v227
    %v1022 = vunpack.c.l.b16 %v228
    %v1023 = vunpack.c.h.b16 %v228
    %v1024 = vunpack.c.l.b16 %v229
    %v1025 = vunpack.c.h.b16 %v229
    %v1026 = vunpack.c.l.b16 %v230
    %v1027 = vunpack.c.h.b16 %v230
    %v1028 = vunpack.c.l.b16 %v231
    %v1029 = vunpack.c.h.b16 %v231
    %v1030 = vunpack.c.l.b16 %v232
    %v1031 = vunpack.c.h.b16 %v232
    %v1032 = vunpack.c.l.b16 %v233
    %v1033 = vunpack.c.h.b16 %v233
    %v1034 = vunpack.c.l.b16 %v234
    %v1035 = vunpack.c.h.b16 %v234
    %v1036 = vunpack.c.l.b16 %v235
    %v1037 = vunpack.c.h.b16 %v235
    %v1038 = vunpack.c.l.b16 %v236
    %v1039 = vunpack.c.h.b16 %v236
    %v1040 = vunpack.c.l.b16 %v237
    %v1041 = vunpack.c.h.b16 %v237
    %v1042 = vunpack.c.l.b16 %v238
    %v1043 = vunpack.c.h.b16 %v238
    %v1044 = vunpack.c.l.b16 %v239
    %v1045 = vunpack.c.h.b16 %v239
    %v1046 = vunpack.c.l.b16 %v240
    %v1047 = vunpack.c.h.b16 %v240
    %v1048 = vunpack.c.l.b16 %v241
    %v1049 = vunpack.c.h.b16 %v241
    %v1050 = vunpack.c.l.b16 %v242
    %v1051 = vunpack.c.h.b16 %v242
    %v1052 = vunpack.c.l.b16 %v243
    %v1053 = vunpack.c.h.b16 %v243
    %v1054 = vunpack.c.l.b16 %v244
    %v1055 = vunpack.c.h.b16 %v244
    %v1056 = vunpack.c.l.b16 %v245
    %v1057 = vunpack.c.h.b16 %v245
    %v1058 = vunpack.c.l.b16 %v246
    %v1059 = vunpack.c.h.b16 %v246
    %v1060 = vunpack.c.l.b16 %v247
    %v1061 = vunpack.c.h.b16 %v247
    %v1062 = vunpack.c.l.b16 %v248
    %v1063 = vunpack.c.h.b16 %v248
    %v1064 = vunpack.c.l.b16 %v249
    %v1065 = vunpack.c.h.b16 %v249
    %v1066 = vunpack.c.l.b16 %v250
    %v1067 = vunpack.c.h.b16 %v250
    %v1068 = vunpack.c.l.b16 %v251
    %v1069 = vunpack.c.h.b16 %v251
    %v1070 = vunpack.c.l.b16 %v252
    %v1071 = vunpack.c.h.b16 %v252
    %v1072 = vunpack.c.l.b16 %v253
    %v1073 = vunpack.c.h.b16 %v253
    %v1074 = vunpack.c.l.b16 %v254
    %v1075 = vunpack.c.h.b16 %v254
    %v1076 = vunpack.c.l.b16 %v255
    %v1077 = vunpack.c.h.b16 %v255
    %v1078 = vunpack.c.l.b16 %v256
    %v1079 = vunpack.c.h.b16 %v256
    %v1080 = vunpack.c.l.b16 %v257
    %v1081 = vunpack.c.h.b16 %v257
    %v1082 = vunpack.c.l.b16 %v258
    %v1083 = vunpack.c.h.b16 %v258
    %v1084 = vunpack.c.l.b16 %v259
    %v1085 = vunpack.c.h.b16 %v259
    %v1086 = vunpack.c.l.b16 %v260
    %v1087 = vunpack.c.h.b16 %v260
    %v1088 = vunpack.c.l.b16 %v261
    %v1089 = vunpack.c.h.b16 %v261
    %v1090 = vunpack.c.l.b16 %v262
    %v1091 = vunpack.c.h.b16 %v262
    %v1092 = vunpack.c.l.b16 %v263
    %v1093 = vunpack.c.h.b16 %v263
    %v1094 = vunpack.c.l.b16 %v264
    %v1095 = vunpack.c.h.b16 %v264
    %v1096 = vunpack.c.l.b16 %v265
    %v1097 = vunpack.c.h.b16 %v265
    %v1098 = vunpack.c.l.b16 %v266
    %v1099 = vunpack.c.h.b16 %v266
    %v1100 = vunpack.c.l.b16 %v267
    %v1101 = vunpack.c.h.b16 %v267
    %v1102 = vunpack.c.l.b16 %v268
    %v1103 = vunpack.c.h.b16 %v268
    %v1104 = vunpack.c.l.b16 %v269
    %v1105 = vunpack.c.h.b16 %v269
    %v1106 = vunpack.c.l.b16 %v270
    %v1107 = vunpack.c.h.b16 %v270
    %v1108 = vunpack.c.l.b16 %v271
    %v1109 = vunpack.c.h.b16 %v271
    %v1110 = vunpack.c.l.b16 %v272
    %v1111 = vunpack.c.h.b16 %v272
    %v1112 = vunpack.c.l.b16 %v273
    %v1113 = vunpack.c.h.b16 %v273
    %v1114 = vunpack.c.l.b16 %v274
    %v1115 = vunpack.c.h.b16 %v274
    %v1116 = vunpack.c.l.b16 %v275
    %v1117 = vunpack.c.h.b16 %v275
    %v1118 = vunpack.c.l.b16 %v276
    %v1119 = vunpack.c.h.b16 %v276
    %v1120 = vunpack.c.l.b16 %v277
    %v1121 = vunpack.c.h.b16 %v277
    %v1122 = vunpack.c.l.b16 %v278
    %v1123 = vunpack.c.h.b16 %v278
    %v1124 = vunpack.c.l.b16 %v279
    %v1125 = vunpack.c.h.b16 %v279
    %v1126 = vunpack.c.l.b16 %v280
    %v1127 = vunpack.c.h.b16 %v280
    %v1128 = vunpack.c.l.b16 %v281
    %v1129 = vunpack.c.h.b16 %v281
    %v1130 = vunpack.c.l.b16 %v282
    %v1131 = vunpack.c.h.b16 %v282
    %v1132 = vunpack.c.l.b16 %v283
    %v1133 = vunpack.c.h.b16 %v283
    %v1134 = vunpack.c.l.b16 %v284
    %v1135 = vunpack.c.h.b16 %v284
    %v1136 = vunpack.c.l.b16 %v285
    %v1137 = vunpack.c.h.b16 %v285
    %v1138 = vunpack.c.l.b16 %v286
    %v1139 = vunpack.c.h.b16 %v286
    %v1140 = vunpack.c.l.b16 %v287
    %v1141 = vunpack.c.h.b16 %v287
    %v1142 = vunpack.c.l.b16 %v288
    %v1143 = vunpack.c.h.b16 %v288
    %v1144 = vunpack.c.l.b16 %v289
    %v1145 = vunpack.c.h.b16 %v289
    %v1146 = vunpack.c.l.b16 %v290
    %v1147 = vunpack.c.h.b16 %v290
    %v1148 = vunpack.c.l.b16 %v291
    %v1149 = vunpack.c.h.b16 %v291
    %v1150 = vunpack.c.l.b16 %v292
    %v1151 = vunpack.c.h.b16 %v292
    %v1152 = vunpack.c.l.b16 %v293
    %v1153 = vunpack.c.h.b16 %v293
    %v1154 = vunpack.c.l.b16 %v294
    %v1155 = vunpack.c.h.b16 %v294
    %v1156 = vunpack.c.l.b16 %v295
    %v1157 = vunpack.c.h.b16 %v295
    %v1158 = vunpack.c.l.b16 %v296
    %v1159 = vunpack.c.h.b16 %v296
    %v1160 = vunpack.c.l.b16 %v297
    %v1161 = vunpack.c.h.b16 %v297
    %v1162 = vunpack.c.l.b16 %v298
    %v1163 = vunpack.c.h.b16 %v298
    %v1164 = vunpack.c.l.b16 %v299
    %v1165 = vunpack.c.h.b16 %v299
    %v1166 = vunpack.c.l.b16 %v300
    %v1167 = vunpack.c.h.b16 %v300
    %v1168 = vunpack.c.l.b16 %v301
    %v1169 = vunpack.c.h.b16 %v301
    %v1170 = vunpack.c.l.b16 %v302
    %v1171 = vunpack.c.h.b16 %v302
    %v1172 = vunpack.c.l.b16 %v303
    %v1173 = vunpack.c.h.b16 %v303
    %v1174 = vunpack.c.l.b16 %v304
    %v1175 = vunpack.c.h.b16 %v304
    %v1176 = vunpack.c.l.b16 %v305
    %v1177 = vunpack.c.h.b16 %v305
    %v1178 = vunpack.c.l.b16 %v306
    %v1179 = vunpack.c.h.b16 %v306
    %v1180 = vunpack.c.l.b16 %v307
    %v1181 = vunpack.c.h.b16 %v307
    %v1182 = vunpack.c.l.b16 %v308
    %v1183 = vunpack.c.h.b16 %v308
    %v1184 = vunpack.c.l.b16 %v309
    %v1185 = vunpack.c.h.b16 %v309
    %v1186 = vunpack.c.l.b16 %v310
    %v1187 = vunpack.c.h.b16 %v310
    %v1188 = vunpack.c.l.b16 %v311
    %v1189 = vunpack.c.h.b16 %v311
    %v1190 = vunpack.c.l.b16 %v312
    %v1191 = vunpack.c.h.b16 %v312
    %v1192 = vunpack.c.l.b16 %v313
    %v1193 = vunpack.c.h.b16 %v313
    %v1194 = vunpack.c.l.b16 %v314
    %v1195 = vunpack.c.h.b16 %v314
    %v1196 = vunpack.c.l.b16 %v315
    %v1197 = vunpack.c.h.b16 %v315
    %v1198 = vunpack.c.l.b16 %v316
    %v1199 = vunpack.c.h.b16 %v316
    %v1200 = vunpack.c.l.b16 %v317
    %v1201 = vunpack.c.h.b16 %v317
    %v1202 = vunpack.c.l.b16 %v318
    %v1203 = vunpack.c.h.b16 %v318
    %v1204 = vunpack.c.l.b16 %v319
    %v1205 = vunpack.c.h.b16 %v319
    %v1206 = vunpack.c.l.b16 %v320
    %v1207 = vunpack.c.h.b16 %v320
    %v1208 = vunpack.c.l.b16 %v321
    %v1209 = vunpack.c.h.b16 %v321
    %v1210 = vunpack.c.l.b16 %v322
    %v1211 = vunpack.c.h.b16 %v322
    %v1212 = vunpack.c.l.b16 %v323
    %v1213 = vunpack.c.h.b16 %v323
    %v1214 = vunpack.c.l.b16 %v324
    %v1215 = vunpack.c.h.b16 %v324
    %v1216 = vunpack.c.l.b16 %v325
    %v1217 = vunpack.c.h.b16 %v325
    %v1218 = vunpack.c.l.b16 %v326
    %v1219 = vunpack.c.h.b16 %v326
    %v1220 = vunpack.c.l.b16 %v327
    %v1221 = vunpack.c.h.b16 %v327
    %v1222 = vunpack.c.l.b16 %v328
    %v1223 = vunpack.c.h.b16 %v328
    %v1224 = vunpack.c.l.b16 %v329
    %v1225 = vunpack.c.h.b16 %v329
    %v1226 = vpack.c.b16 %v716, %v714
    %v1227 = vpack.c.b16 %v717, %v715
    %v1228 = vpack.c.b16 %v720, %v718
    %v1229 = vpack.c.b16 %v721, %v719
    %v1230 = vpack.c.b16 %v724, %v722
    %v1231 = vpack.c.b16 %v725, %v723
    %v1232 = vpack.c.b16 %v728, %v726
    %v1233 = vpack.c.b16 %v729, %v727
    %v1234 = vpack.c.b16 %v732, %v730
    %v1235 = vpack.c.b16 %v733, %v731
    %v1236 = vpack.c.b16 %v736, %v734
    %v1237 = vpack.c.b16 %v737, %v735
    %v1238 = vpack.c.b16 %v740, %v738
    %v1239 = vpack.c.b16 %v741, %v739
    %v1240 = vpack.c.b16 %v744, %v742
    %v1241 = vpack.c.b16 %v745, %v743
    %v1242 = vpack.c.b16 %v748, %v746
    %v1243 = vpack.c.b16 %v749, %v747
    %v1244 = vpack.c.b16 %v752, %v750
    %v1245 = vpack.c.b16 %v753, %v751
    %v1246 = vpack.c.b16 %v756, %v754
    %v1247 = vpack.c.b16 %v757, %v755
    %v1248 = vpack.c.b16 %v760, %v758
    %v1249 = vpack.c.b16 %v761, %v759
    %v1250 = vpack.c.b16 %v764, %v762
    %v1251 = vpack.c.b16 %v765, %v763
    %v1252 = vpack.c.b16 %v768, %v766
    %v1253 = vpack.c.b16 %v769, %v767
    %v1254 = vpack.c.b16 %v772, %v770
    %v1255 = vpack.c.b16 %v773, %v771
    %v1256 = vpack.c.b16 %v776, %v774
    %v1257 = vpack.c.b16 %v777, %v775
    %v1258 = vpack.c.b16 %v780, %v778
    %v1259 = vpack.c.b16 %v781, %v779
    %v1260 = vpack.c.b16 %v784, %v782
    %v1261 = vpack.c.b16 %v785, %v783
    %v1262 = vpack.c.b16 %v788, %v786
    %v1263 = vpack.c.b16 %v789, %v787
    %v1264 = vpack.c.b16 %v792, %v790
    %v1265 = vpack.c.b16 %v793, %v791
    %v1266 = vpack.c.b16 %v796, %v794
    %v1267 = vpack.c.b16 %v797, %v795
    %v1268 = vpack.c.b16 %v800, %v798
    %v1269 = vpack.c.b16 %v801, %v799
    %v1270 = vpack.c.b16 %v804, %v802
    %v1271 = vpack.c.b16 %v805, %v803
    %v1272 = vpack.c.b16 %v808, %v806
    %v1273 = vpack.c.b16 %v809, %v807
    %v1274 = vpack.c.b16 %v812, %v810
    %v1275 = vpack.c.b16 %v813, %v811
    %v1276 = vpack.c.b16 %v816, %v814
    %v1277 = vpack.c.b16 %v817, %v815
    %v1278 = vpack.c.b16 %v820, %v818
    %v1279 = vpack.c.b16 %v821, %v819
    %v1280 = vpack.c.b16 %v824, %v822
    %v1281 = vpack.c.b16 %v825, %v823
    %v1282 = vpack.c.b16 %v828, %v826
    %v1283 = vpack.c.b16 %v829, %v827
    %v1284 = vpack.c.b16 %v832, %v830
    %v1285 = vpack.c.b16 %v833, %v831
    %v1286 = vpack.c.b16 %v836, %v834
    %v1287 = vpack.c.b16 %v837, %v835
    %v1288 = vpack.c.b16 %v840, %v838
    %v1289 = vpack.c.b16 %v841, %v839
    %v1290 = vpack.c.b16 %v844, %v842
    %v1291 = vpack.c.b16 %v845, %v843
    %v1292 = vpack.c.b16 %v848, %v846
    %v1293 = vpack.c.b16 %v849, %v847
    %v1294 = vpack.c.b16 %v852, %v850
    %v1295 = vpack.c.b16 %v853, %v851
    %v1296 = vpack.c.b16 %v856, %v854
    %v1297 = vpack.c.b16 %v857, %v855
    %v1298 = vpack.c.b16 %v860, %v858
    %v1299 = vpack.c.b16 %v861, %v859
    %v1300 = vpack.c.b16 %v864, %v862
    %v1301 = vpack.c.b16 %v865, %v863
    %v1302 = vpack.c.b16 %v868, %v866
    %v1303 = vpack.c.b16 %v869, %v867
    %v1304 = vpack.c.b16 %v872, %v870
    %v1305 = vpack.c.b16 %v873, %v871
    %v1306 = vpack.c.b16 %v876, %v874
    %v1307 = vpack.c.b16 %v877, %v875
    %v1308 = vpack.c.b16 %v880, %v878
    %v1309 = vpack.c.b16 %v881, %v879
    %v1310 = vpack.c.b16 %v884, %v882
    %v1311 = vpack.c.b16 %v885, %v883
    %v1312 = vpack.c.b16 %v888, %v886
    %v1313 = vpack.c.b16 %v889, %v887
    %v1314 = vpack.c.b16 %v892, %v890
    %v1315 = vpack.c.b16 %v893, %v891
    %v1316 = vpack.c.b16 %v896, %v894
    %v1317 = vpack.c.b16 %v897, %v895
    %v1318 = vpack.c.b16 %v900, %v898
    %v1319 = vpack.c.b16 %v901, %v899
    %v1320 = vpack.c.b16 %v904, %v902
    %v1321 = vpack.c.b16 %v905, %v903
    %v1322 = vpack.c.b16 %v908, %v906
    %v1323 = vpack.c.b16 %v909, %v907
    %v1324 = vpack.c.b16 %v912, %v910
    %v1325 = vpack.c.b16 %v913, %v911
    %v1326 = vpack.c.b16 %v916, %v914
    %v1327 = vpack.c.b16 %v917, %v915
    %v1328 = vpack.c.b16 %v920, %v918
    %v1329 = vpack.c.b16 %v921, %v919
    %v1330 = vpack.c.b16 %v924, %v922
    %v1331 = vpack.c.b16 %v925, %v923
    %v1332 = vpack.c.b16 %v928, %v926
    %v1333 = vpack.c.b16 %v929, %v927
    %v1334 = vpack.c.b16 %v932, %v930
    %v1335 = vpack.c.b16 %v933, %v931
    %v1336 = vpack.c.b16 %v936, %v934
    %v1337 = vpack.c.b16 %v937, %v935
    %v1338 = vpack.c.b16 %v940, %v938
    %v1339 = vpack.c.b16 %v941, %v939
    %v1340 = vpack.c.b16 %v944, %v942
    %v1341 = vpack.c.b16 %v945, %v943
    %v1342 = vpack.c.b16 %v948, %v946
    %v1343 = vpack.c.b16 %v949, %v947
    %v1344 = vpack.c.b16 %v952, %v950
    %v1345 = vpack.c.b16 %v953, %v951
    %v1346 = vpack.c.b16 %v956, %v954
    %v1347 = vpack.c.b16 %v957, %v955
    %v1348 = vpack.c.b16 %v960, %v958
    %v1349 = vpack.c.b16 %v961, %v959
    %v1350 = vpack.c.b16 %v964, %v962
    %v1351 = vpack.c.b16 %v965, %v963
    %v1352 = vpack.c.b16 %v968, %v966
    %v1353 = vpack.c.b16 %v969, %v967
    %v1354 = vpack.c.b16 %v972, %v970
    %v1355 = vpack.c.b16 %v973, %v971
    %v1356 = vpack.c.b16 %v976, %v974
    %v1357 = vpack.c.b16 %v977, %v975
    %v1358 = vpack.c.b16 %v980, %v978
    %v1359 = vpack.c.b16 %v981, %v979
    %v1360 = vpack.c.b16 %v984, %v982
    %v1361 = vpack.c.b16 %v985, %v983
    %v1362 = vpack.c.b16 %v988, %v986
    %v1363 = vpack.c.b16 %v989, %v987
    %v1364 = vpack.c.b16 %v992, %v990
    %v1365 = vpack.c.b16 %v993, %v991
    %v1366 = vpack.c.b16 %v996, %v994
    %v1367 = vpack.c.b16 %v997, %v995
    %v1368 = vpack.c.b16 %v1000, %v998
    %v1369 = vpack.c.b16 %v1001, %v999
    %v1370 = vpack.c.b16 %v1004, %v1002
    %v1371 = vpack.c.b16 %v1005, %v1003
    %v1372 = vpack.c.b16 %v1008, %v1006
    %v1373 = vpack.c.b16 %v1009, %v1007
    %v1374 = vpack.c.b16 %v1012, %v1010
    %v1375 = vpack.c.b16 %v1013, %v1011
    %v1376 = vpack.c.b16 %v1016, %v1014
    %v1377 = vpack.c.b16 %v1017, %v1015
    %v1378 = vpack.c.b16 %v1020, %v1018
    %v1379 = vpack.c.b16 %v1021, %v1019
    %v1380 = vpack.c.b16 %v1024, %v1022
    %v1381 = vpack.c.b16 %v1025, %v1023
    %v1382 = vpack.c.b16 %v1028, %v1026
    %v1383 = vpack.c.b16 %v1029, %v1027
    %v1384 = vpack.c.b16 %v1032, %v1030
    %v1385 = vpack.c.b16 %v1033, %v1031
    %v1386 = vpack.c.b16 %v1036, %v1034
    %v1387 = vpack.c.b16 %v1037, %v1035
    %v1388 = vpack.c.b16 %v1040, %v1038
    %v1389 = vpack.c.b16 %v1041, %v1039
    %v1390 = vpack.c.b16 %v1044, %v1042
    %v1391 = vpack.c.b16 %v1045, %v1043
    %v1392 = vpack.c.b16 %v1048, %v1046
    %v1393 = vpack.c.b16 %v1049, %v1047
    %v1394 = vpack.c.b16 %v1052, %v1050
    %v1395 = vpack.c.b16 %v1053, %v1051
    %v1396 = vpack.c.b16 %v1056, %v1054
    %v1397 = vpack.c.b16 %v1057, %v1055
    %v1398 = vpack.c.b16 %v1060, %v1058
    %v1399 = vpack.c.b16 %v1061, %v1059
    %v1400 = vpack.c.b16 %v1064, %v1062
    %v1401 = vpack.c.b16 %v1065, %v1063
    %v1402 = vpack.c.b16 %v1068, %v1066
    %v1403 = vpack.c.b16 %v1069, %v1067
    %v1404 = vpack.c.b16 %v1072, %v1070
    %v1405 = vpack.c.b16 %v1073, %v1071
    %v1406 = vpack.c.b16 %v1076, %v1074
    %v1407 = vpack.c.b16 %v1077, %v1075
    %v1408 = vpack.c.b16 %v1080, %v1078
    %v1409 = vpack.c.b16 %v1081, %v1079
    %v1410 = vpack.c.b16 %v1084, %v1082
    %v1411 = vpack.c.b16 %v1085, %v1083
    %v1412 = vpack.c.b16 %v1088, %v1086
    %v1413 = vpack.c.b16 %v1089, %v1087
    %v1414 = vpack.c.b16 %v1092, %v1090
    %v1415 = vpack.c.b16 %v1093, %v1091
    %v1416 = vpack.c.b16 %v1096, %v1094
    %v1417 = vpack.c.b16 %v1097, %v1095
    %v1418 = vpack.c.b16 %v1100, %v1098
    %v1419 = vpack.c.b16 %v1101, %v1099
    %v1420 = vpack.c.b16 %v1104, %v1102
    %v1421 = vpack.c.b16 %v1105, %v1103
    %v1422 = vpack.c.b16 %v1108, %v1106
    %v1423 = vpack.c.b16 %v1109, %v1107
    %v1424 = vpack.c.b16 %v1112, %v1110
    %v1425 = vpack.c.b16 %v1113, %v1111
    %v1426 = vpack.c.b16 %v1116, %v1114
    %v1427 = vpack.c.b16 %v1117, %v1115
    %v1428 = vpack.c.b16 %v1120, %v1118
    %v1429 = vpack.c.b16 %v1121, %v1119
    %v1430 = vpack.c.b16 %v1124, %v1122
    %v1431 = vpack.c.b16 %v1125, %v1123
    %v1432 = vpack.c.b16 %v1128, %v1126
    %v1433 = vpack.c.b16 %v1129, %v1127
    %v1434 = vpack.c.b16 %v1132, %v1130
    %v1435 = vpack.c.b16 %v1133, %v1131
    %v1436 = vpack.c.b16 %v1136, %v1134
    %v1437 = vpack.c.b16 %v1137, %v1135
    %v1438 = vpack.c.b16 %v1140, %v1138
    %v1439 = vpack.c.b16 %v1141, %v1139
    %v1440 = vpack.c.b16 %v1144, %v1142
    %v1441 = vpack.c.b16 %v1145, %v1143
    %v1442 = vpack.c.b16 %v1148, %v1146
    %v1443 = vpack.c.b16 %v1149, %v1147
    %v1444 = vpack.c.b16 %v1152, %v1150
    %v1445 = vpack.c.b16 %v1153, %v1151
    %v1446 = vpack.c.b16 %v1156, %v1154
    %v1447 = vpack.c.b16 %v1157, %v1155
    %v1448 = vpack.c.b16 %v1160, %v1158
    %v1449 = vpack.c.b16 %v1161, %v1159
    %v1450 = vpack.c.b16 %v1164, %v1162
    %v1451 = vpack.c.b16 %v1165, %v1163
    %v1452 = vpack.c.b16 %v1168, %v1166
    %v1453 = vpack.c.b16 %v1169, %v1167
    %v1454 = vpack.c.b16 %v1172, %v1170
    %v1455 = vpack.c.b16 %v1173, %v1171
    %v1456 = vpack.c.b16 %v1176, %v1174
    %v1457 = vpack.c.b16 %v1177, %v1175
    %v1458 = vpack.c.b16 %v1180, %v1178
    %v1459 = vpack.c.b16 %v1181, %v1179
    %v1460 = vpack.c.b16 %v1184, %v1182
    %v1461 = vpack.c.b16 %v1185, %v1183
    %v1462 = vpack.c.b16 %v1188, %v1186
    %v1463 = vpack.c.b16 %v1189, %v1187
    %v1464 = vpack.c.b16 %v1192, %v1190
    %v1465 = vpack.c.b16 %v1193, %v1191
    %v1466 = vpack.c.b16 %v1196, %v1194
    %v1467 = vpack.c.b16 %v1197, %v1195
    %v1468 = vpack.c.b16 %v1200, %v1198
    %v1469 = vpack.c.b16 %v1201, %v1199
    %v1470 = vpack.c.b16 %v1204, %v1202
    %v1471 = vpack.c.b16 %v1205, %v1203
    %v1472 = vpack.c.b16 %v1208, %v1206
    %v1473 = vpack.c.b16 %v1209, %v1207
    %v1474 = vpack.c.b16 %v1212, %v1210
    %v1475 = vpack.c.b16 %v1213, %v1211
    %v1476 = vpack.c.b16 %v1216, %v1214
    %v1477 = vpack.c.b16 %v1217, %v1215
    %v1478 = vpack.c.b16 %v1220, %v1218
    %v1479 = vpack.c.b16 %v1221, %v1219
    %v1480 = vpack.c.b16 %v1224, %v1222
    %v1481 = vpack.c.b16 %v1225, %v1223
    %1738 = vmatprep.subr.bf16.mxu0 %v1227
    %1739 = vmatpush1.bf16.msra.mxu0 %v1226
    %1740 = vmatprep.subr.bf16.mxu0 %v1229
    %1741 = vmatpush1.bf16.msra.mxu0 %v1228
    %1742 = vmatprep.subr.bf16.mxu0 %v1231
    %1743 = vmatpush1.bf16.msra.mxu0 %v1230
    %1744 = vmatprep.subr.bf16.mxu0 %v1233
    %1745 = vmatpush1.bf16.msra.mxu0 %v1232
    %1746 = vmatprep.subr.bf16.mxu0 %v1235
    %1747 = vmatpush1.bf16.msra.mxu0 %v1234
    %1748 = vmatprep.subr.bf16.mxu0 %v1237
    %1749 = vmatpush1.bf16.msra.mxu0 %v1236
    %1750 = vmatprep.subr.bf16.mxu0 %v1239
    %1751 = vmatpush1.bf16.msra.mxu0 %v1238
    %1752 = vmatprep.subr.bf16.mxu0 %v1241
    %1753 = vmatpush1.bf16.msra.mxu0 %v1240
    %1754 = vmatprep.subr.bf16.mxu0 %v1243
    %1755 = vmatpush1.bf16.msra.mxu0 %v1242
    %1756 = vmatprep.subr.bf16.mxu0 %v1245
    %1757 = vmatpush1.bf16.msra.mxu0 %v1244
    %1758 = vmatprep.subr.bf16.mxu0 %v1247
    %1759 = vmatpush1.bf16.msra.mxu0 %v1246
    %1760 = vmatprep.subr.bf16.mxu0 %v1249
    %1761 = vmatpush1.bf16.msra.mxu0 %v1248
    %1762 = vmatprep.subr.bf16.mxu0 %v1251
    %1763 = vmatpush1.bf16.msra.mxu0 %v1250
    %1764 = vmatprep.subr.bf16.mxu0 %v1253
    %1765 = vmatpush1.bf16.msra.mxu0 %v1252
    %1766 = vmatprep.subr.bf16.mxu0 %v1255
    %1767 = vmatpush1.bf16.msra.mxu0 %v1254
    %1768 = vmatprep.subr.bf16.mxu0 %v1257
    %1769 = vmatpush1.bf16.msra.mxu0 %v1256
    %1770 = vmatprep.mubr.bf16.mxu0 %v381
    %1771 = vmatmul.mubr.bf16.gmra.mrb[0].mxu0 %v367
    %v1772 = vpop.f32.mrb[0].mxu0
    %v1773 = vadd.f32 %v335, %v1772
    %v1774 = vpop.f32.mrb[0].mxu0
    %v1775 = vadd.f32 %v339, %v1774
    %v1776 = vpop.f32.mrb[0].mxu0
    %v1777 = vpop.f32.mrb[0].mxu0
    %1778 = vdwg.mxu0
    %1779 = vmatprep.subr.bf16.mxu0 %v1259
    %1780 = vmatpush1.bf16.msra.mxu0 %v1258
    %1781 = vmatprep.subr.bf16.mxu0 %v1261
    %1782 = vmatpush1.bf16.msra.mxu0 %v1260
    %1783 = vmatprep.subr.bf16.mxu0 %v1263
    %1784 = vmatpush1.bf16.msra.mxu0 %v1262
    %1785 = vmatprep.subr.bf16.mxu0 %v1265
    %1786 = vmatpush1.bf16.msra.mxu0 %v1264
    %1787 = vmatprep.subr.bf16.mxu0 %v1267
    %1788 = vmatpush1.bf16.msra.mxu0 %v1266
    %1789 = vmatprep.subr.bf16.mxu0 %v1269
    %1790 = vmatpush1.bf16.msra.mxu0 %v1268
    %1791 = vmatprep.subr.bf16.mxu0 %v1271
    %1792 = vmatpush1.bf16.msra.mxu0 %v1270
    %1793 = vmatprep.subr.bf16.mxu0 %v1273
    %1794 = vmatpush1.bf16.msra.mxu0 %v1272
    %1795 = vmatprep.subr.bf16.mxu0 %v1275
    %1796 = vmatpush1.bf16.msra.mxu0 %v1274
    %1797 = vmatprep.subr.bf16.mxu0 %v1277
    %1798 = vmatpush1.bf16.msra.mxu0 %v1276
    %1799 = vmatprep.subr.bf16.mxu0 %v1279
    %1800 = vmatpush1.bf16.msra.mxu0 %v1278
    %1801 = vmatprep.subr.bf16.mxu0 %v1281
    %1802 = vmatpush1.bf16.msra.mxu0 %v1280
    %1803 = vmatprep.subr.bf16.mxu0 %v1283
    %1804 = vmatpush1.bf16.msra.mxu0 %v1282
    %1805 = vmatprep.subr.bf16.mxu0 %v1285
    %1806 = vmatpush1.bf16.msra.mxu0 %v1284
    %1807 = vmatprep.subr.bf16.mxu0 %v1287
    %1808 = vmatpush1.bf16.msra.mxu0 %v1286
    %1809 = vmatprep.subr.bf16.mxu0 %v1289
    %1810 = vmatpush1.bf16.msra.mxu0 %v1288
    %1811 = vmatprep.mubr.bf16.mxu0 %v391
    %1812 = vmatmul.mubr.bf16.gmra.mrb[0].mxu0 %v389
    %v1813 = vpop.f32.mrb[0].mxu0
    %v1814 = vadd.f32 %v1773, %v1813
    %v1815 = vpop.f32.mrb[0].mxu0
    %v1816 = vadd.f32 %v1775, %v1815
    %v1817 = vpop.f32.mrb[0].mxu0
    %v1818 = vpop.f32.mrb[0].mxu0
    %1819 = vdwg.mxu0
    %1820 = vmatprep.subr.bf16.mxu0 %v1291
    %1821 = vmatpush1.bf16.msra.mxu0 %v1290
    %1822 = vmatprep.subr.bf16.mxu0 %v1293
    %1823 = vmatpush1.bf16.msra.mxu0 %v1292
    %1824 = vmatprep.subr.bf16.mxu0 %v1295
    %1825 = vmatpush1.bf16.msra.mxu0 %v1294
    %1826 = vmatprep.subr.bf16.mxu0 %v1297
    %1827 = vmatpush1.bf16.msra.mxu0 %v1296
    %1828 = vmatprep.subr.bf16.mxu0 %v1299
    %1829 = vmatpush1.bf16.msra.mxu0 %v1298
    %1830 = vmatprep.subr.bf16.mxu0 %v1301
    %1831 = vmatpush1.bf16.msra.mxu0 %v1300
    %1832 = vmatprep.subr.bf16.mxu0 %v1303
    %1833 = vmatpush1.bf16.msra.mxu0 %v1302
    %1834 = vmatprep.subr.bf16.mxu0 %v1305
    %1835 = vmatpush1.bf16.msra.mxu0 %v1304
    %1836 = vmatprep.subr.bf16.mxu0 %v1307
    %1837 = vmatpush1.bf16.msra.mxu0 %v1306
    %1838 = vmatprep.subr.bf16.mxu0 %v1309
    %1839 = vmatpush1.bf16.msra.mxu0 %v1308
    %1840 = vmatprep.subr.bf16.mxu0 %v1311
    %1841 = vmatpush1.bf16.msra.mxu0 %v1310
    %1842 = vmatprep.subr.bf16.mxu0 %v1313
    %1843 = vmatpush1.bf16.msra.mxu0 %v1312
    %1844 = vmatprep.subr.bf16.mxu0 %v1315
    %1845 = vmatpush1.bf16.msra.mxu0 %v1314
    %1846 = vmatprep.subr.bf16.mxu0 %v1317
    %1847 = vmatpush1.bf16.msra.mxu0 %v1316
    %1848 = vmatprep.subr.bf16.mxu0 %v1319
    %1849 = vmatpush1.bf16.msra.mxu0 %v1318
    %1850 = vmatprep.subr.bf16.mxu0 %v1321
    %1851 = vmatpush1.bf16.msra.mxu0 %v1320
    %1852 = vmatprep.mubr.bf16.mxu0 %v388
    %1853 = vmatmul.mubr.bf16.gmra.mrb[0].mxu0 %v374
    %v1854 = vpop.f32.mrb[0].mxu0
    %v1855 = vadd.f32 %v1814, %v1854
    %v1856 = vpop.f32.mrb[0].mxu0
    %v1857 = vadd.f32 %v1816, %v1856
    %v1858 = vpop.f32.mrb[0].mxu0
    %v1859 = vpop.f32.mrb[0].mxu0
    %1860 = vdwg.mxu0
    %1861 = vmatprep.subr.bf16.mxu0 %v1323
    %1862 = vmatpush1.bf16.msra.mxu0 %v1322
    %1863 = vmatprep.subr.bf16.mxu0 %v1325
    %1864 = vmatpush1.bf16.msra.mxu0 %v1324
    %1865 = vmatprep.subr.bf16.mxu0 %v1327
    %1866 = vmatpush1.bf16.msra.mxu0 %v1326
    %1867 = vmatprep.subr.bf16.mxu0 %v1329
    %1868 = vmatpush1.bf16.msra.mxu0 %v1328
    %1869 = vmatprep.subr.bf16.mxu0 %v1331
    %1870 = vmatpush1.bf16.msra.mxu0 %v1330
    %1871 = vmatprep.subr.bf16.mxu0 %v1333
    %1872 = vmatpush1.bf16.msra.mxu0 %v1332
    %1873 = vmatprep.subr.bf16.mxu0 %v1335
    %1874 = vmatpush1.bf16.msra.mxu0 %v1334
    %1875 = vmatprep.subr.bf16.mxu0 %v1337
    %1876 = vmatpush1.bf16.msra.mxu0 %v1336
    %1877 = vmatprep.subr.bf16.mxu0 %v1339
    %1878 = vmatpush1.bf16.msra.mxu0 %v1338
    %1879 = vmatprep.subr.bf16.mxu0 %v1341
    %1880 = vmatpush1.bf16.msra.mxu0 %v1340
    %1881 = vmatprep.subr.bf16.mxu0 %v1343
    %1882 = vmatpush1.bf16.msra.mxu0 %v1342
    %1883 = vmatprep.subr.bf16.mxu0 %v1345
    %1884 = vmatpush1.bf16.msra.mxu0 %v1344
    %1885 = vmatprep.subr.bf16.mxu0 %v1347
    %1886 = vmatpush1.bf16.msra.mxu0 %v1346
    %1887 = vmatprep.subr.bf16.mxu0 %v1349
    %1888 = vmatpush1.bf16.msra.mxu0 %v1348
    %1889 = vmatprep.subr.bf16.mxu0 %v1351
    %1890 = vmatpush1.bf16.msra.mxu0 %v1350
    %1891 = vmatprep.subr.bf16.mxu0 %v1353
    %1892 = vmatpush1.bf16.msra.mxu0 %v1352
    %1893 = vmatprep.mubr.bf16.mxu0 %v392
    %1894 = vmatmul.mubr.bf16.gmra.mrb[0].mxu0 %v390
    %v1895 = vpop.f32.mrb[0].mxu0
    %v1896 = vadd.f32 %v1855, %v1895
    %v1897 = vpop.f32.mrb[0].mxu0
    %v1898 = vadd.f32 %v1857, %v1897
    %v1899 = vpop.f32.mrb[0].mxu0
    %v1900 = vpop.f32.mrb[0].mxu0
    %1901 = vdwg.mxu0
    %1902 = vmatprep.subr.bf16.mxu0 %v1355
    %1903 = vmatpush1.bf16.msra.mxu0 %v1354
    %1904 = vmatprep.subr.bf16.mxu0 %v1357
    %1905 = vmatpush1.bf16.msra.mxu0 %v1356
    %1906 = vmatprep.subr.bf16.mxu0 %v1359
    %1907 = vmatpush1.bf16.msra.mxu0 %v1358
    %1908 = vmatprep.subr.bf16.mxu0 %v1361
    %1909 = vmatpush1.bf16.msra.mxu0 %v1360
    %1910 = vmatprep.subr.bf16.mxu0 %v1363
    %1911 = vmatpush1.bf16.msra.mxu0 %v1362
    %1912 = vmatprep.subr.bf16.mxu0 %v1365
    %1913 = vmatpush1.bf16.msra.mxu0 %v1364
    %1914 = vmatprep.subr.bf16.mxu0 %v1367
    %1915 = vmatpush1.bf16.msra.mxu0 %v1366
    %1916 = vmatprep.subr.bf16.mxu0 %v1369
    %1917 = vmatpush1.bf16.msra.mxu0 %v1368
    %1918 = vmatprep.subr.bf16.mxu0 %v1371
    %1919 = vmatpush1.bf16.msra.mxu0 %v1370
    %1920 = vmatprep.subr.bf16.mxu0 %v1373
    %1921 = vmatpush1.bf16.msra.mxu0 %v1372
    %1922 = vmatprep.subr.bf16.mxu0 %v1375
    %1923 = vmatpush1.bf16.msra.mxu0 %v1374
    %1924 = vmatprep.subr.bf16.mxu0 %v1377
    %1925 = vmatpush1.bf16.msra.mxu0 %v1376
    %1926 = vmatprep.subr.bf16.mxu0 %v1379
    %1927 = vmatpush1.bf16.msra.mxu0 %v1378
    %1928 = vmatprep.subr.bf16.mxu0 %v1381
    %1929 = vmatpush1.bf16.msra.mxu0 %v1380
    %1930 = vmatprep.subr.bf16.mxu0 %v1383
    %1931 = vmatpush1.bf16.msra.mxu0 %v1382
    %1932 = vmatprep.subr.bf16.mxu0 %v1385
    %1933 = vmatpush1.bf16.msra.mxu0 %v1384
    %1934 = vmatprep.mubr.bf16.mxu0 %v430
    %1935 = vmatmul.mubr.bf16.gmra.mrb[0].mxu0 %v416
    %v1936 = vpop.f32.mrb[0].mxu0
    %v1937 = vadd.f32 %v1896, %v1936
    %v1938 = vpop.f32.mrb[0].mxu0
    %v1939 = vadd.f32 %v1898, %v1938
    %v1940 = vpop.f32.mrb[0].mxu0
    %v1941 = vpop.f32.mrb[0].mxu0
    %1942 = vdwg.mxu0
    %1943 = vmatprep.subr.bf16.mxu0 %v1387
    %1944 = vmatpush1.bf16.msra.mxu0 %v1386
    %1945 = vmatprep.subr.bf16.mxu0 %v1389
    %1946 = vmatpush1.bf16.msra.mxu0 %v1388
    %1947 = vmatprep.subr.bf16.mxu0 %v1391
    %1948 = vmatpush1.bf16.msra.mxu0 %v1390
    %1949 = vmatprep.subr.bf16.mxu0 %v1393
    %1950 = vmatpush1.bf16.msra.mxu0 %v1392
    %1951 = vmatprep.subr.bf16.mxu0 %v1395
    %1952 = vmatpush1.bf16.msra.mxu0 %v1394
    %1953 = vmatprep.subr.bf16.mxu0 %v1397
    %1954 = vmatpush1.bf16.msra.mxu0 %v1396
    %1955 = vmatprep.subr.bf16.mxu0 %v1399
    %1956 = vmatpush1.bf16.msra.mxu0 %v1398
    %1957 = vmatprep.subr.bf16.mxu0 %v1401
    %1958 = vmatpush1.bf16.msra.mxu0 %v1400
    %1959 = vmatprep.subr.bf16.mxu0 %v1403
    %1960 = vmatpush1.bf16.msra.mxu0 %v1402
    %1961 = vmatprep.subr.bf16.mxu0 %v1405
    %1962 = vmatpush1.bf16.msra.mxu0 %v1404
    %1963 = vmatprep.subr.bf16.mxu0 %v1407
    %1964 = vmatpush1.bf16.msra.mxu0 %v1406
    %1965 = vmatprep.subr.bf16.mxu0 %v1409
    %1966 = vmatpush1.bf16.msra.mxu0 %v1408
    %1967 = vmatprep.subr.bf16.mxu0 %v1411
    %1968 = vmatpush1.bf16.msra.mxu0 %v1410
    %1969 = vmatprep.subr.bf16.mxu0 %v1413
    %1970 = vmatpush1.bf16.msra.mxu0 %v1412
    %1971 = vmatprep.subr.bf16.mxu0 %v1415
    %1972 = vmatpush1.bf16.msra.mxu0 %v1414
    %1973 = vmatprep.subr.bf16.mxu0 %v1417
    %1974 = vmatpush1.bf16.msra.mxu0 %v1416
    %1975 = vmatprep.mubr.bf16.mxu0 %v440
    %1976 = vmatmul.mubr.bf16.gmra.mrb[0].mxu0 %v438
    %v1977 = vpop.f32.mrb[0].mxu0
    %v1978 = vadd.f32 %v1937, %v1977
    %v1979 = vpop.f32.mrb[0].mxu0
    %v1980 = vadd.f32 %v1939, %v1979
    %v1981 = vpop.f32.mrb[0].mxu0
    %v1982 = vpop.f32.mrb[0].mxu0
    %1983 = vdwg.mxu0
    %1984 = vmatprep.subr.bf16.mxu0 %v1419
    %1985 = vmatpush1.bf16.msra.mxu0 %v1418
    %1986 = vmatprep.subr.bf16.mxu0 %v1421
    %1987 = vmatpush1.bf16.msra.mxu0 %v1420
    %1988 = vmatprep.subr.bf16.mxu0 %v1423
    %1989 = vmatpush1.bf16.msra.mxu0 %v1422
    %1990 = vmatprep.subr.bf16.mxu0 %v1425
    %1991 = vmatpush1.bf16.msra.mxu0 %v1424
    %1992 = vmatprep.subr.bf16.mxu0 %v1427
    %1993 = vmatpush1.bf16.msra.mxu0 %v1426
    %1994 = vmatprep.subr.bf16.mxu0 %v1429
    %1995 = vmatpush1.bf16.msra.mxu0 %v1428
    %1996 = vmatprep.subr.bf16.mxu0 %v1431
    %1997 = vmatpush1.bf16.msra.mxu0 %v1430
    %1998 = vmatprep.subr.bf16.mxu0 %v1433
    %1999 = vmatpush1.bf16.msra.mxu0 %v1432
    %2000 = vmatprep.subr.bf16.mxu0 %v1435
    %2001 = vmatpush1.bf16.msra.mxu0 %v1434
    %2002 = vmatprep.subr.bf16.mxu0 %v1437
    %2003 = vmatpush1.bf16.msra.mxu0 %v1436
    %2004 = vmatprep.subr.bf16.mxu0 %v1439
    %2005 = vmatpush1.bf16.msra.mxu0 %v1438
    %2006 = vmatprep.subr.bf16.mxu0 %v1441
    %2007 = vmatpush1.bf16.msra.mxu0 %v1440
    %2008 = vmatprep.subr.bf16.mxu0 %v1443
    %2009 = vmatpush1.bf16.msra.mxu0 %v1442
    %2010 = vmatprep.subr.bf16.mxu0 %v1445
    %2011 = vmatpush1.bf16.msra.mxu0 %v1444
    %2012 = vmatprep.subr.bf16.mxu0 %v1447
    %2013 = vmatpush1.bf16.msra.mxu0 %v1446
    %2014 = vmatprep.subr.bf16.mxu0 %v1449
    %2015 = vmatpush1.bf16.msra.mxu0 %v1448
    %2016 = vmatprep.mubr.bf16.mxu0 %v437
    %2017 = vmatmul.mubr.bf16.gmra.mrb[0].mxu0 %v423
    %v2018 = vpop.f32.mrb[0].mxu0
    %v2019 = vadd.f32 %v1978, %v2018
    %v2020 = vpop.f32.mrb[0].mxu0
    %v2021 = vadd.f32 %v1980, %v2020
    %v2022 = vpop.f32.mrb[0].mxu0
    %v2023 = vpop.f32.mrb[0].mxu0
    %2024 = vdwg.mxu0
    %2025 = vmatprep.subr.bf16.mxu0 %v1451
    %2026 = vmatpush1.bf16.msra.mxu0 %v1450
    %2027 = vmatprep.subr.bf16.mxu0 %v1453
    %2028 = vmatpush1.bf16.msra.mxu0 %v1452
    %2029 = vmatprep.subr.bf16.mxu0 %v1455
    %2030 = vmatpush1.bf16.msra.mxu0 %v1454
    %2031 = vmatprep.subr.bf16.mxu0 %v1457
    %2032 = vmatpush1.bf16.msra.mxu0 %v1456
    %2033 = vmatprep.subr.bf16.mxu0 %v1459
    %2034 = vmatpush1.bf16.msra.mxu0 %v1458
    %2035 = vmatprep.subr.bf16.mxu0 %v1461
    %2036 = vmatpush1.bf16.msra.mxu0 %v1460
    %2037 = vmatprep.subr.bf16.mxu0 %v1463
    %2038 = vmatpush1.bf16.msra.mxu0 %v1462
    %2039 = vmatprep.subr.bf16.mxu0 %v1465
    %2040 = vmatpush1.bf16.msra.mxu0 %v1464
    %2041 = vmatprep.subr.bf16.mxu0 %v1467
    %2042 = vmatpush1.bf16.msra.mxu0 %v1466
    %2043 = vmatprep.subr.bf16.mxu0 %v1469
    %2044 = vmatpush1.bf16.msra.mxu0 %v1468
    %2045 = vmatprep.subr.bf16.mxu0 %v1471
    %2046 = vmatpush1.bf16.msra.mxu0 %v1470
    %2047 = vmatprep.subr.bf16.mxu0 %v1473
    %2048 = vmatpush1.bf16.msra.mxu0 %v1472
    %2049 = vmatprep.subr.bf16.mxu0 %v1475
    %2050 = vmatpush1.bf16.msra.mxu0 %v1474
    %2051 = vmatprep.subr.bf16.mxu0 %v1477
    %2052 = vmatpush1.bf16.msra.mxu0 %v1476
    %2053 = vmatprep.subr.bf16.mxu0 %v1479
    %2054 = vmatpush1.bf16.msra.mxu0 %v1478
    %2055 = vmatprep.subr.bf16.mxu0 %v1481
    %2056 = vmatpush1.bf16.msra.mxu0 %v1480
    %2057 = vmatprep.mubr.bf16.mxu0 %v441
    %2058 = vmatmul.mubr.bf16.gmra.mrb[0].mxu0 %v439
    %v2059 = vpop.f32.mrb[0].mxu0
    %v2060 = vadd.f32 %v2019, %v2059
    %v2061 = vpop.f32.mrb[0].mxu0
    %v2062 = vadd.f32 %v2021, %v2061
    %v2063 = vpop.f32.mrb[0].mxu0
    %v2064 = vpop.f32.mrb[0].mxu0
    %2065 = vdwg.mxu0
    %v2066 = vld [vmem:[#allocation5] sm:$0xf]
    %v2069 = vunpack.c.l.s4 1983009808
    %v2070 = vunpack.c.0.s8 %v2069
    %v2071 = vlaneseq
    %v2072 = vshrl.u32 %v2071, 7
    %v2073 = vsub.s32 %v2070, %v2072
    %v2074 = vrot.slane %v2066, %v2073
    %v2075 = vcombine.high %v2074, %v2074
    %v2078 = vpack.c.bf16 %v2074, %v2074
    %v2079 = vpack.c.bf16 %v2075, %v2075
    %v2080 = vld [vmem:[#allocation8] sm:$0xff]
    %v2081 = vld [vmem:[#allocation8 + $0x8] sm:$0xff]
    %v2082 = vld [vmem:[#allocation8 + $0x10] sm:$0xff]
    %v2083 = vld [vmem:[#allocation8 + $0x18] sm:$0xff]
    %v2084 = vld [vmem:[#allocation8 + $0x20] sm:$0xff]
    %v2085 = vld [vmem:[#allocation8 + $0x28] sm:$0xff]
    %v2086 = vld [vmem:[#allocation8 + $0x30] sm:$0xff]
    %v2087 = vld [vmem:[#allocation8 + $0x38] sm:$0xff]
    %v2088 = vld [vmem:[#allocation8 + $0x40] sm:$0xff]
    %v2089 = vld [vmem:[#allocation8 + $0x48] sm:$0xff]
    %v2090 = vld [vmem:[#allocation8 + $0x50] sm:$0xff]
    %v2091 = vld [vmem:[#allocation8 + $0x58] sm:$0xff]
    %v2092 = vld [vmem:[#allocation8 + $0x60] sm:$0xff]
    %v2093 = vld [vmem:[#allocation8 + $0x68] sm:$0xff]
    %v2094 = vld [vmem:[#allocation8 + $0x70] sm:$0xff]
    %v2095 = vld [vmem:[#allocation8 + $0x78] sm:$0xff]
    %v2096 = vld [vmem:[#allocation8 + $0x80] sm:$0xff]
    %v2097 = vld [vmem:[#allocation8 + $0x88] sm:$0xff]
    %v2098 = vld [vmem:[#allocation8 + $0x90] sm:$0xff]
    %v2099 = vld [vmem:[#allocation8 + $0x98] sm:$0xff]
    %v2100 = vld [vmem:[#allocation8 + $0xa0] sm:$0xff]
    %v2101 = vld [vmem:[#allocation8 + $0xa8] sm:$0xff]
    %v2102 = vld [vmem:[#allocation8 + $0xb0] sm:$0xff]
    %v2103 = vld [vmem:[#allocation8 + $0xb8] sm:$0xff]
    %v2104 = vld [vmem:[#allocation8 + $0xc0] sm:$0xff]
    %v2105 = vld [vmem:[#allocation8 + $0xc8] sm:$0xff]
    %v2106 = vld [vmem:[#allocation8 + $0xd0] sm:$0xff]
    %v2107 = vld [vmem:[#allocation8 + $0xd8] sm:$0xff]
    %v2108 = vld [vmem:[#allocation8 + $0xe0] sm:$0xff]
    %v2109 = vld [vmem:[#allocation8 + $0xe8] sm:$0xff]
    %v2110 = vld [vmem:[#allocation8 + $0xf0] sm:$0xff]
    %v2111 = vld [vmem:[#allocation8 + $0xf8] sm:$0xff]
    %v2144 = vunpack.c.l.b16 %v2080
    %v2145 = vunpack.c.h.b16 %v2080
    %v2146 = vunpack.c.l.b16 %v2081
    %v2147 = vunpack.c.h.b16 %v2081
    %v2148 = vunpack.c.l.b16 %v2082
    %v2149 = vunpack.c.h.b16 %v2082
    %v2150 = vunpack.c.l.b16 %v2083
    %v2151 = vunpack.c.h.b16 %v2083
    %v2152 = vunpack.c.l.b16 %v2084
    %v2153 = vunpack.c.h.b16 %v2084
    %v2154 = vunpack.c.l.b16 %v2085
    %v2155 = vunpack.c.h.b16 %v2085
    %v2156 = vunpack.c.l.b16 %v2086
    %v2157 = vunpack.c.h.b16 %v2086
    %v2158 = vunpack.c.l.b16 %v2087
    %v2159 = vunpack.c.h.b16 %v2087
    %v2160 = vunpack.c.l.b16 %v2088
    %v2161 = vunpack.c.h.b16 %v2088
    %v2162 = vunpack.c.l.b16 %v2089
    %v2163 = vunpack.c.h.b16 %v2089
    %v2164 = vunpack.c.l.b16 %v2090
    %v2165 = vunpack.c.h.b16 %v2090
    %v2166 = vunpack.c.l.b16 %v2091
    %v2167 = vunpack.c.h.b16 %v2091
    %v2168 = vunpack.c.l.b16 %v2092
    %v2169 = vunpack.c.h.b16 %v2092
    %v2170 = vunpack.c.l.b16 %v2093
    %v2171 = vunpack.c.h.b16 %v2093
    %v2172 = vunpack.c.l.b16 %v2094
    %v2173 = vunpack.c.h.b16 %v2094
    %v2174 = vunpack.c.l.b16 %v2095
    %v2175 = vunpack.c.h.b16 %v2095
    %v2176 = vunpack.c.l.b16 %v2096
    %v2177 = vunpack.c.h.b16 %v2096
    %v2178 = vunpack.c.l.b16 %v2097
    %v2179 = vunpack.c.h.b16 %v2097
    %v2180 = vunpack.c.l.b16 %v2098
    %v2181 = vunpack.c.h.b16 %v2098
    %v2182 = vunpack.c.l.b16 %v2099
    %v2183 = vunpack.c.h.b16 %v2099
    %v2184 = vunpack.c.l.b16 %v2100
    %v2185 = vunpack.c.h.b16 %v2100
    %v2186 = vunpack.c.l.b16 %v2101
    %v2187 = vunpack.c.h.b16 %v2101
    %v2188 = vunpack.c.l.b16 %v2102
    %v2189 = vunpack.c.h.b16 %v2102
    %v2190 = vunpack.c.l.b16 %v2103
    %v2191 = vunpack.c.h.b16 %v2103
    %v2192 = vunpack.c.l.b16 %v2104
    %v2193 = vunpack.c.h.b16 %v2104
    %v2194 = vunpack.c.l.b16 %v2105
    %v2195 = vunpack.c.h.b16 %v2105
    %v2196 = vunpack.c.l.b16 %v2106
    %v2197 = vunpack.c.h.b16 %v2106
    %v2198 = vunpack.c.l.b16 %v2107
    %v2199 = vunpack.c.h.b16 %v2107
    %v2200 = vunpack.c.l.b16 %v2108
    %v2201 = vunpack.c.h.b16 %v2108
    %v2202 = vunpack.c.l.b16 %v2109
    %v2203 = vunpack.c.h.b16 %v2109
    %v2204 = vunpack.c.l.b16 %v2110
    %v2205 = vunpack.c.h.b16 %v2110
    %v2206 = vunpack.c.l.b16 %v2111
    %v2207 = vunpack.c.h.b16 %v2111
    %v2208 = vpack.c.b16 %v2146, %v2144
    %v2209 = vpack.c.b16 %v2147, %v2145
    %v2210 = vpack.c.b16 %v2150, %v2148
    %v2211 = vpack.c.b16 %v2151, %v2149
    %v2212 = vpack.c.b16 %v2154, %v2152
    %v2213 = vpack.c.b16 %v2155, %v2153
    %v2214 = vpack.c.b16 %v2158, %v2156
    %v2215 = vpack.c.b16 %v2159, %v2157
    %v2216 = vpack.c.b16 %v2162, %v2160
    %v2217 = vpack.c.b16 %v2163, %v2161
    %v2218 = vpack.c.b16 %v2166, %v2164
    %v2219 = vpack.c.b16 %v2167, %v2165
    %v2220 = vpack.c.b16 %v2170, %v2168
    %v2221 = vpack.c.b16 %v2171, %v2169
    %v2222 = vpack.c.b16 %v2174, %v2172
    %v2223 = vpack.c.b16 %v2175, %v2173
    %v2224 = vpack.c.b16 %v2178, %v2176
    %v2225 = vpack.c.b16 %v2179, %v2177
    %v2226 = vpack.c.b16 %v2182, %v2180
    %v2227 = vpack.c.b16 %v2183, %v2181
    %v2228 = vpack.c.b16 %v2186, %v2184
    %v2229 = vpack.c.b16 %v2187, %v2185
    %v2230 = vpack.c.b16 %v2190, %v2188
    %v2231 = vpack.c.b16 %v2191, %v2189
    %v2232 = vpack.c.b16 %v2194, %v2192
    %v2233 = vpack.c.b16 %v2195, %v2193
    %v2234 = vpack.c.b16 %v2198, %v2196
    %v2235 = vpack.c.b16 %v2199, %v2197
    %v2236 = vpack.c.b16 %v2202, %v2200
    %v2237 = vpack.c.b16 %v2203, %v2201
    %v2238 = vpack.c.b16 %v2206, %v2204
    %v2239 = vpack.c.b16 %v2207, %v2205
    %2272 = vmatprep.subr.bf16.mxu0 %v2209
    %2273 = vmatpush1.bf16.msra.mxu0 %v2208
    %2274 = vmatprep.subr.bf16.mxu0 %v2211
    %2275 = vmatpush1.bf16.msra.mxu0 %v2210
    %2276 = vmatprep.subr.bf16.mxu0 %v2213
    %2277 = vmatpush1.bf16.msra.mxu0 %v2212
    %2278 = vmatprep.subr.bf16.mxu0 %v2215
    %2279 = vmatpush1.bf16.msra.mxu0 %v2214
    %2280 = vmatprep.subr.bf16.mxu0 %v2217
    %2281 = vmatpush1.bf16.msra.mxu0 %v2216
    %2282 = vmatprep.subr.bf16.mxu0 %v2219
    %2283 = vmatpush1.bf16.msra.mxu0 %v2218
    %2284 = vmatprep.subr.bf16.mxu0 %v2221
    %2285 = vmatpush1.bf16.msra.mxu0 %v2220
    %2286 = vmatprep.subr.bf16.mxu0 %v2223
    %2287 = vmatpush1.bf16.msra.mxu0 %v2222
    %2288 = vmatprep.subr.bf16.mxu0 %v2225
    %2289 = vmatpush1.bf16.msra.mxu0 %v2224
    %2290 = vmatprep.subr.bf16.mxu0 %v2227
    %2291 = vmatpush1.bf16.msra.mxu0 %v2226
    %2292 = vmatprep.subr.bf16.mxu0 %v2229
    %2293 = vmatpush1.bf16.msra.mxu0 %v2228
    %2294 = vmatprep.subr.bf16.mxu0 %v2231
    %2295 = vmatpush1.bf16.msra.mxu0 %v2230
    %2296 = vmatprep.subr.bf16.mxu0 %v2233
    %2297 = vmatpush1.bf16.msra.mxu0 %v2232
    %2298 = vmatprep.subr.bf16.mxu0 %v2235
    %2299 = vmatpush1.bf16.msra.mxu0 %v2234
    %2300 = vmatprep.subr.bf16.mxu0 %v2237
    %2301 = vmatpush1.bf16.msra.mxu0 %v2236
    %2302 = vmatprep.subr.bf16.mxu0 %v2239
    %2303 = vmatpush1.bf16.msra.mxu0 %v2238
    %2304 = vmatprep.mubr.bf16.mxu0 %v2079
    %2305 = vmatmul.mubr.bf16.gmra.mrb[0].mxu0 %v2078
    %v2306 = vpop.f32.mrb[0].mxu0
    %v2307 = vadd.f32 0.0, %v2306
    %v2308 = vpop.f32.mrb[0].mxu0
    %v2309 = vadd.f32 0.0, %v2308
    %v2310 = vpop.f32.mrb[0].mxu0
    %v2311 = vpop.f32.mrb[0].mxu0
    %2312 = vdwg.mxu0
    %v2315 = vcombine.low %v2307, %v2309
    %v2317 = vunpack.c.l.s4 1983009808
    %v2318 = vunpack.c.0.s8 %v2317
    %v2319 = vlaneseq
    %v2320 = vshrl.u32 %v2319, 7
    %v2321 = vsub.s32 %v2318, %v2320
    %v2322 = vrot.slane %v2315, %v2321
    %v2324 = vadd.f32 %v2066, %v2322
    %v2327 = vcombine.low %v2060, %v2062
    %v2329 = vunpack.c.l.s4 1983009808
    %v2330 = vunpack.c.0.s8 %v2329
    %v2331 = vlaneseq
    %v2332 = vshrl.u32 %v2331, 7
    %v2333 = vsub.s32 %v2330, %v2332
    %v2334 = vrot.slane %v2327, %v2333
    %v2336 = vadd.f32 %v2324, %v2334
    %v2339 = vunpack.c.l.s4 1983009808
    %v2340 = vunpack.c.0.s8 %v2339
    %v2341 = vlaneseq
    %v2342 = vshrl.u32 %v2341, 7
    %v2343 = vsub.s32 %v2340, %v2342
    %v2344 = vrot.slane %v2336, %v2343
    %v2345 = vcombine.high %v2344, %v2344
    %v2348 = vpack.c.bf16 %v2344, %v2344
    %v2349 = vpack.c.bf16 %v2345, %v2345
    %2350 = vmatprep.subr.bf16.mxu0 %v2209
    %2351 = vmatpush1.bf16.msra.mxu0 %v2208
    %2352 = vmatprep.subr.bf16.mxu0 %v2211
    %2353 = vmatpush1.bf16.msra.mxu0 %v2210
    %2354 = vmatprep.subr.bf16.mxu0 %v2213
    %2355 = vmatpush1.bf16.msra.mxu0 %v2212
    %2356 = vmatprep.subr.bf16.mxu0 %v2215
    %2357 = vmatpush1.bf16.msra.mxu0 %v2214
    %2358 = vmatprep.subr.bf16.mxu0 %v2217
    %2359 = vmatpush1.bf16.msra.mxu0 %v2216
    %2360 = vmatprep.subr.bf16.mxu0 %v2219
    %2361 = vmatpush1.bf16.msra.mxu0 %v2218
    %2362 = vmatprep.subr.bf16.mxu0 %v2221
    %2363 = vmatpush1.bf16.msra.mxu0 %v2220
    %2364 = vmatprep.subr.bf16.mxu0 %v2223
    %2365 = vmatpush1.bf16.msra.mxu0 %v2222
    %2366 = vmatprep.subr.bf16.mxu0 %v2225
    %2367 = vmatpush1.bf16.msra.mxu0 %v2224
    %2368 = vmatprep.subr.bf16.mxu0 %v2227
    %2369 = vmatpush1.bf16.msra.mxu0 %v2226
    %2370 = vmatprep.subr.bf16.mxu0 %v2229
    %2371 = vmatpush1.bf16.msra.mxu0 %v2228
    %2372 = vmatprep.subr.bf16.mxu0 %v2231
    %2373 = vmatpush1.bf16.msra.mxu0 %v2230
    %2374 = vmatprep.subr.bf16.mxu0 %v2233
    %2375 = vmatpush1.bf16.msra.mxu0 %v2232
    %2376 = vmatprep.subr.bf16.mxu0 %v2235
    %2377 = vmatpush1.bf16.msra.mxu0 %v2234
    %2378 = vmatprep.subr.bf16.mxu0 %v2237
    %2379 = vmatpush1.bf16.msra.mxu0 %v2236
    %2380 = vmatprep.subr.bf16.mxu0 %v2239
    %2381 = vmatpush1.bf16.msra.mxu0 %v2238
    %2382 = vmatprep.mubr.bf16.mxu0 %v2349
    %2383 = vmatmul.mubr.bf16.gmra.mrb[0].mxu0 %v2348
    %v2384 = vpop.f32.mrb[0].mxu0
    %v2385 = vadd.f32 0.0, %v2384
    %v2386 = vpop.f32.mrb[0].mxu0
    %v2387 = vadd.f32 0.0, %v2386
    %v2388 = vpop.f32.mrb[0].mxu0
    %v2389 = vpop.f32.mrb[0].mxu0
    %2390 = vdwg.mxu0
    %v2393 = vcombine.low %v2385, %v2387
    %v2395 = vunpack.c.l.s4 1983009808
    %v2396 = vunpack.c.0.s8 %v2395
    %v2397 = vlaneseq
    %v2398 = vshrl.u32 %v2397, 7
    %v2399 = vsub.s32 %v2396, %v2398
    %v2400 = vrot.slane %v2393, %v2399
    %v2402 = vadd.f32 %v2336, %v2400
    %v2403 = vadd.f32 %v2402, %v2334
    %v2406 = vunpack.c.l.s4 1983009808
    %v2407 = vunpack.c.0.s8 %v2406
    %v2408 = vlaneseq
    %v2409 = vshrl.u32 %v2408, 7
    %v2410 = vsub.s32 %v2407, %v2409
    %v2411 = vrot.slane %v2403, %v2410
    %v2412 = vcombine.high %v2411, %v2411
    %v2415 = vpack.c.bf16 %v2411, %v2411
    %v2416 = vpack.c.bf16 %v2412, %v2412
    %2417 = vmatprep.subr.bf16.mxu0 %v2209
    %2418 = vmatpush1.bf16.msra.mxu0 %v2208
    %2419 = vmatprep.subr.bf16.mxu0 %v2211
    %2420 = vmatpush1.bf16.msra.mxu0 %v2210
    %2421 = vmatprep.subr.bf16.mxu0 %v2213
    %2422 = vmatpush1.bf16.msra.mxu0 %v2212
    %2423 = vmatprep.subr.bf16.mxu0 %v2215
    %2424 = vmatpush1.bf16.msra.mxu0 %v2214
    %2425 = vmatprep.subr.bf16.mxu0 %v2217
    %2426 = vmatpush1.bf16.msra.mxu0 %v2216
    %2427 = vmatprep.subr.bf16.mxu0 %v2219
    %2428 = vmatpush1.bf16.msra.mxu0 %v2218
    %2429 = vmatprep.subr.bf16.mxu0 %v2221
    %2430 = vmatpush1.bf16.msra.mxu0 %v2220
    %2431 = vmatprep.subr.bf16.mxu0 %v2223
    %2432 = vmatpush1.bf16.msra.mxu0 %v2222
    %2433 = vmatprep.subr.bf16.mxu0 %v2225
    %2434 = vmatpush1.bf16.msra.mxu0 %v2224
    %2435 = vmatprep.subr.bf16.mxu0 %v2227
    %2436 = vmatpush1.bf16.msra.mxu0 %v2226
    %2437 = vmatprep.subr.bf16.mxu0 %v2229
    %2438 = vmatpush1.bf16.msra.mxu0 %v2228
    %2439 = vmatprep.subr.bf16.mxu0 %v2231
    %2440 = vmatpush1.bf16.msra.mxu0 %v2230
    %2441 = vmatprep.subr.bf16.mxu0 %v2233
    %2442 = vmatpush1.bf16.msra.mxu0 %v2232
    %2443 = vmatprep.subr.bf16.mxu0 %v2235
    %2444 = vmatpush1.bf16.msra.mxu0 %v2234
    %2445 = vmatprep.subr.bf16.mxu0 %v2237
    %2446 = vmatpush1.bf16.msra.mxu0 %v2236
    %2447 = vmatprep.subr.bf16.mxu0 %v2239
    %2448 = vmatpush1.bf16.msra.mxu0 %v2238
    %2449 = vmatprep.mubr.bf16.mxu0 %v2416
    %2450 = vmatmul.mubr.bf16.gmra.mrb[0].mxu0 %v2415
    %v2451 = vpop.f32.mrb[0].mxu0
    %v2452 = vadd.f32 0.0, %v2451
    %v2453 = vpop.f32.mrb[0].mxu0
    %v2454 = vadd.f32 0.0, %v2453
    %v2455 = vpop.f32.mrb[0].mxu0
    %v2456 = vpop.f32.mrb[0].mxu0
    %2457 = vdwg.mxu0
    %v2460 = vcombine.low %v2452, %v2454
    %v2462 = vunpack.c.l.s4 1983009808
    %v2463 = vunpack.c.0.s8 %v2462
    %v2464 = vlaneseq
    %v2465 = vshrl.u32 %v2464, 7
    %v2466 = vsub.s32 %v2463, %v2465
    %v2467 = vrot.slane %v2460, %v2466
    %v2469 = vadd.f32 %v2403, %v2467
    %v2470 = vadd.f32 %v2469, %v2334
    %2471 = vst [vmem:[#allocation10] sm:$0xf] %v2470
    // Predicated region
    $region38: #{tpu_custom_call.1} parent=1 // pred_check
      _
    $region39: #{tpu_custom_call.1} parent=1 // pred_check_branch
      %2473 = sbr.rel (0) target = $region41
    $region40: #{tpu_custom_call.1} parent=1 // pred_region
      %s2475 = ssub.s32 64, 64
      %2476 = vsyncadd [#allocation4], %s2475
      %s2478 = sshll.u32 [#allocation10], 4
      %s2479 = int_to_ptr.vmem [resolvable:$true] %s2478
      %2481 = dma.vmem_to_hbm [thread:$0]  %s2479, 64, %s5, [#allocation4]
    $region41: #{tpu_custom_call.1} parent=1 // pred_fallthru
      _
    // Predicated region
    $region42: #{tpu_custom_call.1} parent=1 // pred_check
      _
    $region43: #{tpu_custom_call.1} parent=1 // pred_check_branch
      %2483 = sbr.rel (0) target = $region45
    $region44: #{tpu_custom_call.1} parent=1 // pred_region
      %2484 = dma.done [#allocation4], 64
    $region45: #{tpu_custom_call.1} parent=1 // pred_fallthru
      _
    %2485 = vsyncpa [#allocation3], 1
    %2486 = vsyncpa [#allocation6], 1
    %2487 = vsyncpa [#allocation9], 1
    %2488 = vsyncpa [#allocation4], 1

</llo_original>
